<compile_context>
chip_gen: v5e
topology: v5e:2x2
jax: 0.10.0
libtpu: 0.0.40
codegen_flags: <defaults>
</compile_context>

<pallas_src>
import jax
import jax.numpy as jnp
from jax import lax
from jax.experimental import pallas as pl
from jax.experimental.pallas import tpu as pltpu

H_DIM = 128            # hidden width of gnet
CH_OUT = 2             # gnet output channels (mu_1, sigma_1)
LANE = 256             # spatial tiles kept a multiple of 256 (lane-dense, MXU)
DEFAULT_TILE_N = 8192  # padded-pixel columns per grid step


def _round_up(x, m):
    return ((x + m - 1) // m) * m


# ----------------------------------------------------------------------------
# Kernel factory: one (batch, column-tile) step per grid point.
#   xc_ref / xn_ref : (Cin, TILE) bf16  flattened zero-padded cost volume
#                     (current tile and the next tile, used only for the halo)
#   gmm_ref         : (2,   TILE) f32   ref_gmm (row 0 = mu_0, row 1 = sigma_0)
#   w*/b*           : gnet parameters (conv weights in matmul form)
#   out_ref         : (2,   TILE) f32   mv_gmm (row 0 = mu_new, row 1 = sigma_new)
#   patch_ref       : (K1P, TILE) bf16  scratch holding the in-kernel im2col
# ----------------------------------------------------------------------------
def _make_kernel(cin, tile, halo_pad, offsets, k1p):
    n_taps = len(offsets)            # 9
    k1 = n_taps * cin                # conv1 tap rows
    ones_row = k1                    # bias row (folds conv1 bias into the dot)
    n_zero = k1p - k1 - 1            # zero rows padding K up to a 16-multiple

    def kernel(xc_ref, xn_ref, gmm_ref,
               w1_ref, w2_ref, b2_ref, w3_ref, b3_ref, w4_ref, b4_ref,
               out_ref, patch_ref):
        # ---- in-kernel im2col: current tile + right halo from next tile ----
        xw = jnp.concatenate([xc_ref[...], xn_ref[:, :halo_pad]], axis=1)
        for t, off in enumerate(offsets):                 # static 9-tap loop
            patch_ref[t * cin:(t + 1) * cin, :] = xw[:, off:off + tile]
        patch_ref[ones_row:ones_row + 1, :] = jnp.ones((1, tile), jnp.bfloat16)
        if n_zero > 0:
            patch_ref[ones_row + 1:, :] = jnp.zeros((n_zero, tile), jnp.bfloat16)

        # conv3x3 (matmul over the patch scratch, bias folded) + ReLU
        h = jnp.dot(w1_ref[...], patch_ref[...],
                    preferred_element_type=jnp.float32)
        h = jnp.maximum(h, 0.0).astype(jnp.bfloat16)
        # conv1x1 + ReLU
        h = jnp.dot(w2_ref[...], h, preferred_element_type=jnp.float32) + b2_ref[...]
        h = jnp.maximum(h, 0.0).astype(jnp.bfloat16)
        # conv1x1 + ReLU
        h = jnp.dot(w3_ref[...], h, preferred_element_type=jnp.float32) + b3_ref[...]
        h = jnp.maximum(h, 0.0).astype(jnp.bfloat16)
        # conv1x1 -> (2, TILE), f32
        d = jnp.dot(w4_ref[...], h, preferred_element_type=jnp.float32) + b4_ref[...]

        mu_0 = gmm_ref[0:1, :]
        sigma_0 = gmm_ref[1:2, :]
        mu_1 = d[0:1, :]
        sigma_1 = d[1:2, :]

        # GMM update epilogue in f32, direct row stores (no concatenate).
        out_ref[0:1, :] = mu_0 + mu_1 * sigma_0
        elu = jnp.where(sigma_1 > 0.0,
                        sigma_1,
                        jnp.exp(jnp.minimum(sigma_1, 0.0)) - 1.0)  # F.elu, alpha=1
        out_ref[1:2, :] = (elu + (1.0 + 1e-10)) * sigma_0

    return kernel


# ----------------------------------------------------------------------------
# Wrapper: NCHW in/out; only pad + reshape glue in plain JAX, compute in kernel.
# ----------------------------------------------------------------------------
def gnet_forward(cost_volume, ref_gmm, params, *, tile_n=DEFAULT_TILE_N):
    """cost_volume: (B, Cin, H, W), ref_gmm: (B, 2, H, W)  -> (B, 2, H, W)."""
    B, Cin, H, W = cost_volume.shape
    Hp, Wp = H + 2, W + 2                 # conv3x3 / pad=1 padded spatial dims
    Np2 = Hp * Wp                         # columns per image (padded coords)
    halo = 2 * Wp + 2                     # max im2col tap offset
    n_taps = 9
    K1 = n_taps * Cin
    K1P = _round_up(K1 + 1, 16)           # +1 ones row (bias), 16-align K

    # ---- tile selection (multiple of LANE; halo must fit inside one tile) ----
    tile = _round_up(max(int(tile_n), LANE), LANE)
    tile = min(tile, _round_up(Np2, LANE))
    if B == 1 and Np2 > 2 * LANE:
        # keep at least two spatial tiles so megacore chips can split the grid
        tile = min(tile, _round_up(pl.cdiv(Np2, 2), LANE))
    tile = max(tile, _round_up(halo, LANE))
    halo_pad = _round_up(halo, 128)       # <= tile by construction
    Np2_pad = _round_up(Np2, tile)
    n_tiles = Np2_pad // tile

    # ---- layout glue: bf16 cast + pads + reshapes only (no transposes) ----
    x = cost_volume.astype(jnp.bfloat16)
    x = jnp.pad(x, ((0, 0), (0, 0), (1, 1), (1, 1)))            # conv padding
    x = x.reshape(B, Cin, Np2)
    # round columns up to the tile AND append one extra zero tile so the
    # "next tile" halo read is always in range (those extra values are only
    # ever consumed by padded garbage columns that get sliced off).
    x = jnp.pad(x, ((0, 0), (0, 0), (0, Np2_pad + tile - Np2)))

    g = ref_gmm.astype(jnp.float32)
    g = jnp.pad(g, ((0, 0), (0, 0), (0, 2), (0, 2)))            # padded coords
    g = g.reshape(B, 2, Np2)
    g = jnp.pad(g, ((0, 0), (0, 0), (0, Np2_pad - Np2)))

    # ---- parameters ----
    w1, b1, w2, b2, w3, b3, w4, b4 = params
    # conv1 weights reordered to the kernel's (tap, cin) patch-row order, with
    # the bias folded in as an extra column and zero columns up to K1P.
    w1r = w1.reshape(H_DIM, Cin, 3, 3).transpose(0, 2, 3, 1).reshape(H_DIM, K1)
    w1m = jnp.concatenate(
        [w1r, b1.reshape(H_DIM, 1),
         jnp.zeros((H_DIM, K1P - K1 - 1), w1r.dtype)], axis=1).astype(jnp.bfloat16)
    w2m = w2.reshape(H_DIM, H_DIM).astype(jnp.bfloat16)
    w3m = w3.reshape(H_DIM, H_DIM).astype(jnp.bfloat16)
    w4m = w4.reshape(CH_OUT, H_DIM).astype(jnp.bfloat16)
    b2c = b2.reshape(H_DIM, 1).astype(jnp.float32)
    b3c = b3.reshape(H_DIM, 1).astype(jnp.float32)
    b4c = b4.reshape(CH_OUT, 1).astype(jnp.float32)

    # tap offsets in flattened padded coordinates: off = dy*(W+2) + dx
    offsets = [dy * Wp + dx for dy in range(3) for dx in range(3)]
    kernel = _make_kernel(Cin, tile, halo_pad, offsets, K1P)

    def col_spec(rows, index_map):
        return pl.BlockSpec((None, rows, tile), index_map)

    cur_map = lambda b, n: (b, 0, n)
    nxt_map = lambda b, n: (b, 0, n + 1)      # extra zero tile keeps this legal

    def full_spec(shape):
        return pl.BlockSpec(shape, lambda b, n: (0,) * len(shape))

    cols = B * Np2_pad
    cost = pl.CostEstimate(
        flops=int(2 * cols * H_DIM * (K1P + 2 * H_DIM + CH_OUT)),
        transcendentals=int(cols),
        bytes_accessed=int(2 * x.size * 2 + g.size * 4 + cols * 2 * 4
                           + (w1m.size + w2m.size + w3m.size + w4m.size) * 2
                           + (b2c.size + b3c.size + b4c.size) * 4))

    out = pl.pallas_call(
        kernel,
        out_shape=jax.ShapeDtypeStruct((B, 2, Np2_pad), jnp.float32),
        grid=(B, n_tiles),
        in_specs=[
            col_spec(Cin, cur_map),                  # cost volume, current tile
            col_spec(Cin, nxt_map),                  # cost volume, halo source
            col_spec(2, cur_map),                    # ref_gmm
            full_spec((H_DIM, K1P)),                 # conv1 weights (+bias col)
            full_spec((H_DIM, H_DIM)), full_spec((H_DIM, 1)),    # conv2
            full_spec((H_DIM, H_DIM)), full_spec((H_DIM, 1)),    # conv3
            full_spec((CH_OUT, H_DIM)), full_spec((CH_OUT, 1)),  # conv4
        ],
        out_specs=col_spec(2, cur_map),
        scratch_shapes=[pltpu.VMEM((K1P, tile), jnp.bfloat16)],
        compiler_params=pltpu.CompilerParams(
            dimension_semantics=("parallel", "parallel"),
            vmem_limit_bytes=32 * 1024 * 1024),
        cost_estimate=cost,
    )(x, x, g, w1m, w2m, b2c, w3m, b3c, w4m, b4c)

    out = out[:, :, :Np2].reshape(B, 2, Hp, Wp)[:, :, :H, :W]
    return out


# ----------------------------------------------------------------------------
# Pure-JAX reference (lax.conv, f32) for correctness checking.
# ----------------------------------------------------------------------------
def gnet_reference(cost_volume, ref_gmm, params):
    w1, b1, w2, b2, w3, b3, w4, b4 = params
    dn = ('NCHW', 'OIHW', 'NCHW')

    def conv(x, w, b, pad):
        y = lax.conv_general_dilated(x, w, (1, 1), [(pad, pad)] * 2,
                                     dimension_numbers=dn)
        return y + b.reshape(1, -1, 1, 1)

    h = jax.nn.relu(conv(cost_volume, w1, b1, 1))
    h = jax.nn.relu(conv(h, w2, b2, 0))
    h = jax.nn.relu(conv(h, w3, b3, 0))
    d = conv(h, w4, b4, 0)

    mu_0, sigma_0 = ref_gmm[:, 0:1], ref_gmm[:, 1:2]
    mu_1, sigma_1 = d[:, 0:1], d[:, 1:2]
    mu_new = mu_0 + mu_1 * sigma_0
    sigma_new = (jax.nn.elu(sigma_1) + 1.0 + 1e-10) * sigma_0
    return jnp.concatenate([mu_new, sigma_new], axis=1)


def init_params(key, ch_in):
    ks = jax.random.split(key, 8)
    s = 0.1
    w1 = s * jax.random.normal(ks[0], (H_DIM, ch_in, 3, 3), jnp.float32)
    b1 = s * jax.random.normal(ks[1], (H_DIM,), jnp.float32)
    w2 = s * jax.random.normal(ks[2], (H_DIM, H_DIM, 1, 1), jnp.float32)
    b2 = s * jax.random.normal(ks[3], (H_DIM,), jnp.float32)
    w3 = s * jax.random.normal(ks[4], (H_DIM, H_DIM, 1, 1), jnp.float32)
    b3 = s * jax.random.normal(ks[5], (H_DIM,), jnp.float32)
    w4 = s * jax.random.normal(ks[6], (CH_OUT, H_DIM, 1, 1), jnp.float32)
    b4 = s * jax.random.normal(ks[7], (CH_OUT,), jnp.float32)
    return (w1, b1, w2, b2, w3, b3, w4, b4)


if __name__ == "__main__":
    key = jax.random.PRNGKey(0)
    k_x, k_g, k_p = jax.random.split(key, 3)

    B, CH_IN, H, W = 2, 4, 16, 16
    cost_volume = jax.random.normal(k_x, (B, CH_IN, H, W), jnp.float32)
    # ref_gmm: channel 0 = mu_0, channel 1 = sigma_0 (keep sigma_0 positive)
    mu0 = jax.random.normal(k_g, (B, 1, H, W), jnp.float32)
    sig0 = jax.nn.softplus(jax.random.normal(k_p, (B, 1, H, W), jnp.float32)) + 0.1
    ref_gmm = jnp.concatenate([mu0, sig0], axis=1)

    params = init_params(jax.random.PRNGKey(42), CH_IN)

    ref = jax.block_until_ready(gnet_reference(cost_volume, ref_gmm, params))

    # Small tile -> multi-tile grid exercising the real next-tile halo path;
    # default tile -> single spatial tile per batch.  Both must match.
    for tn in (256, DEFAULT_TILE_N):
        out = jax.block_until_ready(
            gnet_forward(cost_volume, ref_gmm, params, tile_n=tn))
        assert out.shape == (B, 2, H, W)
        # bf16 matmul inputs (f32 accumulation) -> slightly looser tolerance vs
        # the f32 lax.conv reference.
        assert jnp.allclose(out, ref, atol=2e-2, rtol=2e-2), \
            f"mismatch vs reference (tile_n={tn})"

    print("KERNEL_OK")
</pallas_src>

<mosaic_0001>
module attributes {stable_mosaic.version = 11 : i64} {
  func.func @kernel(%arg0: i32, %arg1: i32, %arg2: memref<1x4x256xbf16, #tpu.memory_space<vmem>>, %arg3: memref<1x4x256xbf16, #tpu.memory_space<vmem>>, %arg4: memref<1x2x256xf32, #tpu.memory_space<vmem>>, %arg5: memref<128x48xbf16, #tpu.memory_space<vmem>>, %arg6: memref<128x128xbf16, #tpu.memory_space<vmem>>, %arg7: memref<128x1xf32, #tpu.memory_space<vmem>>, %arg8: memref<128x128xbf16, #tpu.memory_space<vmem>>, %arg9: memref<128x1xf32, #tpu.memory_space<vmem>>, %arg10: memref<2x128xbf16, #tpu.memory_space<vmem>>, %arg11: memref<2x1xf32, #tpu.memory_space<vmem>>, %arg12: memref<1x2x256xf32, #tpu.memory_space<vmem>>, %arg13: memref<48x256xbf16, #tpu.memory_space<vmem>>) attributes {dimension_semantics = [#tpu.dimension_semantics<parallel>, #tpu.dimension_semantics<parallel>], iteration_bounds = array<i64: 2, 2>, scalar_prefetch = 0 : i64, scratch_operands = 1 : i64, tpu.core_type = #tpu.core_type<tc>, window_params = [{transform_indices = @transform_0, window_bounds = array<i64: 1, 4, 256>}, {transform_indices = @transform_1, window_bounds = array<i64: 1, 4, 256>}, {transform_indices = @transform_2, window_bounds = array<i64: 1, 2, 256>}, {pipeline_mode = #tpu.pipeline_mode<synchronous>, transform_indices = @transform_3, window_bounds = array<i64: 128, 48>}, {pipeline_mode = #tpu.pipeline_mode<synchronous>, transform_indices = @transform_4, window_bounds = array<i64: 128, 128>}, {pipeline_mode = #tpu.pipeline_mode<synchronous>, transform_indices = @transform_5, window_bounds = array<i64: 128, 1>}, {pipeline_mode = #tpu.pipeline_mode<synchronous>, transform_indices = @transform_6, window_bounds = array<i64: 128, 128>}, {pipeline_mode = #tpu.pipeline_mode<synchronous>, transform_indices = @transform_7, window_bounds = array<i64: 128, 1>}, {pipeline_mode = #tpu.pipeline_mode<synchronous>, transform_indices = @transform_8, window_bounds = array<i64: 2, 128>}, {pipeline_mode = #tpu.pipeline_mode<synchronous>, transform_indices = @transform_9, window_bounds = array<i64: 2, 1>}, {transform_indices = @transform_10, window_bounds = array<i64: 1, 2, 256>}]} {
    %c0 = arith.constant 0 : index
    %c0_0 = arith.constant 0 : index
    %c0_1 = arith.constant 0 : index
    %0 = vector.load %arg2[%c0, %c0_0, %c0_1] : memref<1x4x256xbf16, #tpu.memory_space<vmem>>, vector<1x4x256xbf16>
    %1 = vector.shape_cast %0 : vector<1x4x256xbf16> to vector<4x256xbf16>
    %c0_2 = arith.constant 0 : index
    %c0_3 = arith.constant 0 : index
    %c0_4 = arith.constant 0 : index
    %2 = vector.load %arg3[%c0_2, %c0_3, %c0_4] : memref<1x4x256xbf16, #tpu.memory_space<vmem>>, vector<1x4x128xbf16>
    %3 = vector.shape_cast %2 : vector<1x4x128xbf16> to vector<4x128xbf16>
    %4 = tpu.concatenate %1, %3 in 1 : vector<4x256xbf16>, vector<4x128xbf16> -> vector<4x384xbf16>
    %5 = vector.extract_strided_slice %4 {offsets = [0, 0], sizes = [4, 256], strides = [1, 1]} : vector<4x384xbf16> to vector<4x256xbf16>
    %c0_5 = arith.constant 0 : index
    %c0_6 = arith.constant 0 : index
    %6 = vector.load %arg13[%c0_5, %c0_6] : memref<48x256xbf16, #tpu.memory_space<vmem>>, vector<4x256xbf16>
    tpu.vector_store %arg13[%c0_5, %c0_6], %5 {strides = array<i32>} : memref<48x256xbf16, #tpu.memory_space<vmem>>, vector<4x256xbf16>,
    %7 = vector.extract_strided_slice %4 {offsets = [0, 1], sizes = [4, 256], strides = [1, 1]} : vector<4x384xbf16> to vector<4x256xbf16>
    %c4 = arith.constant 4 : index
    %c0_7 = arith.constant 0 : index
    %8 = vector.load %arg13[%c4, %c0_7] : memref<48x256xbf16, #tpu.memory_space<vmem>>, vector<4x256xbf16>
    tpu.vector_store %arg13[%c4, %c0_7], %7 {strides = array<i32>} : memref<48x256xbf16, #tpu.memory_space<vmem>>, vector<4x256xbf16>,
    %9 = vector.extract_strided_slice %4 {offsets = [0, 2], sizes = [4, 256], strides = [1, 1]} : vector<4x384xbf16> to vector<4x256xbf16>
    %c8 = arith.constant 8 : index
    %c0_8 = arith.constant 0 : index
    %10 = vector.load %arg13[%c8, %c0_8] : memref<48x256xbf16, #tpu.memory_space<vmem>>, vector<4x256xbf16>
    tpu.vector_store %arg13[%c8, %c0_8], %9 {strides = array<i32>} : memref<48x256xbf16, #tpu.memory_space<vmem>>, vector<4x256xbf16>,
    %11 = vector.extract_strided_slice %4 {offsets = [0, 18], sizes = [4, 256], strides = [1, 1]} : vector<4x384xbf16> to vector<4x256xbf16>
    %c12 = arith.constant 12 : index
    %c0_9 = arith.constant 0 : index
    %12 = vector.load %arg13[%c12, %c0_9] : memref<48x256xbf16, #tpu.memory_space<vmem>>, vector<4x256xbf16>
    tpu.vector_store %arg13[%c12, %c0_9], %11 {strides = array<i32>} : memref<48x256xbf16, #tpu.memory_space<vmem>>, vector<4x256xbf16>,
    %13 = vector.extract_strided_slice %4 {offsets = [0, 19], sizes = [4, 256], strides = [1, 1]} : vector<4x384xbf16> to vector<4x256xbf16>
    %c16 = arith.constant 16 : index
    %c0_10 = arith.constant 0 : index
    %14 = vector.load %arg13[%c16, %c0_10] : memref<48x256xbf16, #tpu.memory_space<vmem>>, vector<4x256xbf16>
    tpu.vector_store %arg13[%c16, %c0_10], %13 {strides = array<i32>} : memref<48x256xbf16, #tpu.memory_space<vmem>>, vector<4x256xbf16>,
    %15 = vector.extract_strided_slice %4 {offsets = [0, 20], sizes = [4, 256], strides = [1, 1]} : vector<4x384xbf16> to vector<4x256xbf16>
    %c20 = arith.constant 20 : index
    %c0_11 = arith.constant 0 : index
    %16 = vector.load %arg13[%c20, %c0_11] : memref<48x256xbf16, #tpu.memory_space<vmem>>, vector<4x256xbf16>
    tpu.vector_store %arg13[%c20, %c0_11], %15 {strides = array<i32>} : memref<48x256xbf16, #tpu.memory_space<vmem>>, vector<4x256xbf16>,
    %17 = vector.extract_strided_slice %4 {offsets = [0, 36], sizes = [4, 256], strides = [1, 1]} : vector<4x384xbf16> to vector<4x256xbf16>
    %c24 = arith.constant 24 : index
    %c0_12 = arith.constant 0 : index
    %18 = vector.load %arg13[%c24, %c0_12] : memref<48x256xbf16, #tpu.memory_space<vmem>>, vector<4x256xbf16>
    tpu.vector_store %arg13[%c24, %c0_12], %17 {strides = array<i32>} : memref<48x256xbf16, #tpu.memory_space<vmem>>, vector<4x256xbf16>,
    %19 = vector.extract_strided_slice %4 {offsets = [0, 37], sizes = [4, 256], strides = [1, 1]} : vector<4x384xbf16> to vector<4x256xbf16>
    %c28 = arith.constant 28 : index
    %c0_13 = arith.constant 0 : index
    %20 = vector.load %arg13[%c28, %c0_13] : memref<48x256xbf16, #tpu.memory_space<vmem>>, vector<4x256xbf16>
    tpu.vector_store %arg13[%c28, %c0_13], %19 {strides = array<i32>} : memref<48x256xbf16, #tpu.memory_space<vmem>>, vector<4x256xbf16>,
    %21 = vector.extract_strided_slice %4 {offsets = [0, 38], sizes = [4, 256], strides = [1, 1]} : vector<4x384xbf16> to vector<4x256xbf16>
    %c32 = arith.constant 32 : index
    %c0_14 = arith.constant 0 : index
    %22 = vector.load %arg13[%c32, %c0_14] : memref<48x256xbf16, #tpu.memory_space<vmem>>, vector<4x256xbf16>
    tpu.vector_store %arg13[%c32, %c0_14], %21 {strides = array<i32>} : memref<48x256xbf16, #tpu.memory_space<vmem>>, vector<4x256xbf16>,
    %cst = arith.constant 1.000000e+00 : bf16
    %23 = vector.broadcast %cst : bf16 to vector<1x256xbf16>
    %c36 = arith.constant 36 : index
    %c0_15 = arith.constant 0 : index
    %24 = vector.load %arg13[%c36, %c0_15] : memref<48x256xbf16, #tpu.memory_space<vmem>>, vector<1x256xbf16>
    tpu.vector_store %arg13[%c36, %c0_15], %23 {strides = array<i32>} : memref<48x256xbf16, #tpu.memory_space<vmem>>, vector<1x256xbf16>,
    %cst_16 = arith.constant 0.000000e+00 : bf16
    %25 = vector.broadcast %cst_16 : bf16 to vector<11x256xbf16>
    %c37 = arith.constant 37 : index
    %c0_17 = arith.constant 0 : index
    %26 = vector.load %arg13[%c37, %c0_17] : memref<48x256xbf16, #tpu.memory_space<vmem>>, vector<11x256xbf16>
    tpu.vector_store %arg13[%c37, %c0_17], %25 {strides = array<i32>} : memref<48x256xbf16, #tpu.memory_space<vmem>>, vector<11x256xbf16>,
    %c0_18 = arith.constant 0 : index
    %c0_19 = arith.constant 0 : index
    %27 = vector.load %arg5[%c0_18, %c0_19] : memref<128x48xbf16, #tpu.memory_space<vmem>>, vector<128x48xbf16>
    %c0_20 = arith.constant 0 : index
    %c0_21 = arith.constant 0 : index
    %28 = vector.load %arg13[%c0_20, %c0_21] : memref<48x256xbf16, #tpu.memory_space<vmem>>, vector<48x256xbf16>
    %cst_22 = arith.constant dense<0.000000e+00> : vector<128x256xf32>
    %29 = tpu.matmul %27, %28, %cst_22 {dimension_numbers = #tpu.dot_dimension_numbers<[1], [0], [0], [1], [0, 0, 1, 1], [], []>} : vector<128x48xbf16>, vector<48x256xbf16>, vector<128x256xf32> -> vector<128x256xf32>
    %cst_23 = arith.constant 0.000000e+00 : f32
    %30 = vector.broadcast %cst_23 : f32 to vector<128x256xf32>
    %31 = arith.maximumf %29, %30 : vector<128x256xf32>
    %32 = arith.truncf %31 : vector<128x256xf32> to vector<128x256xbf16>
    %c0_24 = arith.constant 0 : index
    %c0_25 = arith.constant 0 : index
    %33 = vector.load %arg6[%c0_24, %c0_25] : memref<128x128xbf16, #tpu.memory_space<vmem>>, vector<128x128xbf16>
    %cst_26 = arith.constant dense<0.000000e+00> : vector<128x256xf32>
    %34 = tpu.matmul %33, %32, %cst_26 {dimension_numbers = #tpu.dot_dimension_numbers<[1], [0], [0], [1], [0, 0, 1, 1], [], []>} : vector<128x128xbf16>, vector<128x256xbf16>, vector<128x256xf32> -> vector<128x256xf32>
    %c0_27 = arith.constant 0 : index
    %c0_28 = arith.constant 0 : index
    %35 = vector.load %arg7[%c0_27, %c0_28] : memref<128x1xf32, #tpu.memory_space<vmem>>, vector<128x1xf32>
    %36 = vector.broadcast %35 : vector<128x1xf32> to vector<128x256xf32>
    %37 = arith.addf %34, %36 : vector<128x256xf32>
    %cst_29 = arith.constant 0.000000e+00 : f32
    %38 = vector.broadcast %cst_29 : f32 to vector<128x256xf32>
    %39 = arith.maximumf %37, %38 : vector<128x256xf32>
    %40 = arith.truncf %39 : vector<128x256xf32> to vector<128x256xbf16>
    %c0_30 = arith.constant 0 : index
    %c0_31 = arith.constant 0 : index
    %41 = vector.load %arg8[%c0_30, %c0_31] : memref<128x128xbf16, #tpu.memory_space<vmem>>, vector<128x128xbf16>
    %cst_32 = arith.constant dense<0.000000e+00> : vector<128x256xf32>
    %42 = tpu.matmul %41, %40, %cst_32 {dimension_numbers = #tpu.dot_dimension_numbers<[1], [0], [0], [1], [0, 0, 1, 1], [], []>} : vector<128x128xbf16>, vector<128x256xbf16>, vector<128x256xf32> -> vector<128x256xf32>
    %c0_33 = arith.constant 0 : index
    %c0_34 = arith.constant 0 : index
    %43 = vector.load %arg9[%c0_33, %c0_34] : memref<128x1xf32, #tpu.memory_space<vmem>>, vector<128x1xf32>
    %44 = vector.broadcast %43 : vector<128x1xf32> to vector<128x256xf32>
    %45 = arith.addf %42, %44 : vector<128x256xf32>
    %cst_35 = arith.constant 0.000000e+00 : f32
    %46 = vector.broadcast %cst_35 : f32 to vector<128x256xf32>
    %47 = arith.maximumf %45, %46 : vector<128x256xf32>
    %48 = arith.truncf %47 : vector<128x256xf32> to vector<128x256xbf16>
    %c0_36 = arith.constant 0 : index
    %c0_37 = arith.constant 0 : index
    %49 = vector.load %arg10[%c0_36, %c0_37] : memref<2x128xbf16, #tpu.memory_space<vmem>>, vector<2x128xbf16>
    %cst_38 = arith.constant dense<0.000000e+00> : vector<2x256xf32>
    %50 = tpu.matmul %49, %48, %cst_38 {dimension_numbers = #tpu.dot_dimension_numbers<[1], [0], [0], [1], [0, 0, 1, 1], [], []>} : vector<2x128xbf16>, vector<128x256xbf16>, vector<2x256xf32> -> vector<2x256xf32>
    %c0_39 = arith.constant 0 : index
    %c0_40 = arith.constant 0 : index
    %51 = vector.load %arg11[%c0_39, %c0_40] : memref<2x1xf32, #tpu.memory_space<vmem>>, vector<2x1xf32>
    %52 = vector.broadcast %51 : vector<2x1xf32> to vector<2x256xf32>
    %53 = arith.addf %50, %52 : vector<2x256xf32>
    %c0_41 = arith.constant 0 : index
    %c0_42 = arith.constant 0 : index
    %c0_43 = arith.constant 0 : index
    %54 = vector.load %arg4[%c0_41, %c0_42, %c0_43] : memref<1x2x256xf32, #tpu.memory_space<vmem>>, vector<1x1x256xf32>
    %55 = vector.shape_cast %54 : vector<1x1x256xf32> to vector<1x256xf32>
    %c0_44 = arith.constant 0 : index
    %c1 = arith.constant 1 : index
    %c0_45 = arith.constant 0 : index
    %56 = vector.load %arg4[%c0_44, %c1, %c0_45] : memref<1x2x256xf32, #tpu.memory_space<vmem>>, vector<1x1x256xf32>
    %57 = vector.shape_cast %56 : vector<1x1x256xf32> to vector<1x256xf32>
    %58 = vector.extract_strided_slice %53 {offsets = [0, 0], sizes = [1, 256], strides = [1, 1]} : vector<2x256xf32> to vector<1x256xf32>
    %59 = vector.extract_strided_slice %53 {offsets = [1, 0], sizes = [1, 256], strides = [1, 1]} : vector<2x256xf32> to vector<1x256xf32>
    %60 = arith.mulf %58, %57 : vector<1x256xf32>
    %61 = arith.addf %55, %60 : vector<1x256xf32>
    %c0_46 = arith.constant 0 : index
    %c0_47 = arith.constant 0 : index
    %c0_48 = arith.constant 0 : index
    %62 = vector.load %arg12[%c0_46, %c0_47, %c0_48] : memref<1x2x256xf32, #tpu.memory_space<vmem>>, vector<1x1x256xf32>
    %63 = vector.shape_cast %62 : vector<1x1x256xf32> to vector<1x256xf32>
    %64 = vector.shape_cast %61 : vector<1x256xf32> to vector<1x1x256xf32>
    tpu.vector_store %arg12[%c0_46, %c0_47, %c0_48], %64 {strides = array<i32>} : memref<1x2x256xf32, #tpu.memory_space<vmem>>, vector<1x1x256xf32>,
    %cst_49 = arith.constant 0.000000e+00 : f32
    %65 = vector.broadcast %cst_49 : f32 to vector<1x256xf32>
    %66 = arith.cmpf ogt, %59, %65 : vector<1x256xf32>
    %cst_50 = arith.constant 0.000000e+00 : f32
    %67 = vector.broadcast %cst_50 : f32 to vector<1x256xf32>
    %68 = arith.minimumf %59, %67 : vector<1x256xf32>
    %69 = math.exp %68 : vector<1x256xf32>
    %cst_51 = arith.constant 1.000000e+00 : f32
    %70 = vector.broadcast %cst_51 : f32 to vector<1x256xf32>
    %71 = arith.subf %69, %70 : vector<1x256xf32>
    %72 = arith.select %66, %59, %71 : vector<1x256xi1>, vector<1x256xf32>
    %cst_52 = arith.constant 1.000000e+00 : f32
    %73 = vector.broadcast %cst_52 : f32 to vector<1x256xf32>
    %74 = arith.addf %72, %73 : vector<1x256xf32>
    %75 = arith.mulf %74, %57 : vector<1x256xf32>
    %c0_53 = arith.constant 0 : index
    %c1_54 = arith.constant 1 : index
    %c0_55 = arith.constant 0 : index
    %76 = vector.load %arg12[%c0_53, %c1_54, %c0_55] : memref<1x2x256xf32, #tpu.memory_space<vmem>>, vector<1x1x256xf32>
    %77 = vector.shape_cast %76 : vector<1x1x256xf32> to vector<1x256xf32>
    %78 = vector.shape_cast %75 : vector<1x256xf32> to vector<1x1x256xf32>
    tpu.vector_store %arg12[%c0_53, %c1_54, %c0_55], %78 {strides = array<i32>} : memref<1x2x256xf32, #tpu.memory_space<vmem>>, vector<1x1x256xf32>,
    return
  }
  func.func @transform_0(%arg0: i32, %arg1: i32) -> (i32, i32, i32) {
    %c0_i32 = arith.constant 0 : i32
    %c0_i32_0 = arith.constant 0 : i32
    return %arg0, %c0_i32, %arg1 : i32, i32, i32
  }
  func.func @transform_1(%arg0: i32, %arg1: i32) -> (i32, i32, i32) {
    %c1_i32 = arith.constant 1 : i32
    %0 = arith.addi %arg1, %c1_i32 : i32
    %c0_i32 = arith.constant 0 : i32
    %c0_i32_0 = arith.constant 0 : i32
    return %arg0, %c0_i32, %0 : i32, i32, i32
  }
  func.func @transform_2(%arg0: i32, %arg1: i32) -> (i32, i32, i32) {
    %c0_i32 = arith.constant 0 : i32
    %c0_i32_0 = arith.constant 0 : i32
    return %arg0, %c0_i32, %arg1 : i32, i32, i32
  }
  func.func @transform_3(%arg0: i32, %arg1: i32) -> (i32, i32) {
    %c0_i32 = arith.constant 0 : i32
    %c0_i32_0 = arith.constant 0 : i32
    %c0_i32_1 = arith.constant 0 : i32
    return %c0_i32, %c0_i32_0 : i32, i32
  }
  func.func @transform_4(%arg0: i32, %arg1: i32) -> (i32, i32) {
    %c0_i32 = arith.constant 0 : i32
    %c0_i32_0 = arith.constant 0 : i32
    %c0_i32_1 = arith.constant 0 : i32
    return %c0_i32, %c0_i32_0 : i32, i32
  }
  func.func @transform_5(%arg0: i32, %arg1: i32) -> (i32, i32) {
    %c0_i32 = arith.constant 0 : i32
    %c0_i32_0 = arith.constant 0 : i32
    %c0_i32_1 = arith.constant 0 : i32
    return %c0_i32, %c0_i32_0 : i32, i32
  }
  func.func @transform_6(%arg0: i32, %arg1: i32) -> (i32, i32) {
    %c0_i32 = arith.constant 0 : i32
    %c0_i32_0 = arith.constant 0 : i32
    %c0_i32_1 = arith.constant 0 : i32
    return %c0_i32, %c0_i32_0 : i32, i32
  }
  func.func @transform_7(%arg0: i32, %arg1: i32) -> (i32, i32) {
    %c0_i32 = arith.constant 0 : i32
    %c0_i32_0 = arith.constant 0 : i32
    %c0_i32_1 = arith.constant 0 : i32
    return %c0_i32, %c0_i32_0 : i32, i32
  }
  func.func @transform_8(%arg0: i32, %arg1: i32) -> (i32, i32) {
    %c0_i32 = arith.constant 0 : i32
    %c0_i32_0 = arith.constant 0 : i32
    %c0_i32_1 = arith.constant 0 : i32
    return %c0_i32, %c0_i32_0 : i32, i32
  }
  func.func @transform_9(%arg0: i32, %arg1: i32) -> (i32, i32) {
    %c0_i32 = arith.constant 0 : i32
    %c0_i32_0 = arith.constant 0 : i32
    %c0_i32_1 = arith.constant 0 : i32
    return %c0_i32, %c0_i32_0 : i32, i32
  }
  func.func @transform_10(%arg0: i32, %arg1: i32) -> (i32, i32, i32) {
    %c0_i32 = arith.constant 0 : i32
    %c0_i32_0 = arith.constant 0 : i32
    return %arg0, %c0_i32, %arg1 : i32, i32, i32
  }
}

</mosaic_0001>

<llo_original>
// kernel: tpu_custom_call.1
$region0: #{tpu_custom_call.1}
  #allocation0 [shape = 'u32[]', space=smem, size = 0x4, offset = 0x4, fixed_abs, tag = 'smem constant byte address 0x4 - core index']
  #allocation1 [shape = 'u32[72,128]{1,0:T(1,128)}', space=vmem, size = 0x9000, scoped, tag = 'internal scratch']
  #allocation2 [shape = 'bf16[48,256]{1,0:T(8,128)(2,1)}', space=vmem, size = 0x6000, scoped, tag = 'scratch operand']
  %s0 = inlined_call_operand.vmem [shape: bf16[2,4,768], index: 0, kind: input, shape index: {}]
  %s1 = inlined_call_operand.vmem [shape: bf16[2,4,768], index: 1, kind: input, shape index: {}]
  %s2 = inlined_call_operand.vmem [shape: f32[2,2,512], index: 2, kind: input, shape index: {}]
  %s3 = inlined_call_operand.vmem [shape: bf16[128,48], index: 3, kind: input, shape index: {}]
  %s4 = inlined_call_operand.vmem [shape: bf16[128,128], index: 4, kind: input, shape index: {}]
  %s5 = inlined_call_operand.vmem [shape: f32[128,1], index: 5, kind: input, shape index: {}]
  %s6 = inlined_call_operand.vmem [shape: bf16[128,128], index: 6, kind: input, shape index: {}]
  %s7 = inlined_call_operand.vmem [shape: f32[128,1], index: 7, kind: input, shape index: {}]
  %s8 = inlined_call_operand.vmem [shape: bf16[2,128], index: 8, kind: input, shape index: {}]
  %s9 = inlined_call_operand.vmem [shape: f32[2,1], index: 9, kind: input, shape index: {}]
  %s10 = inlined_call_operand.hbm [shape: f32[2,2,512], index: 10, kind: output, shape index: {}]
  %s11 = sld [smem:[#allocation0]]
  $region73: #{tpu_custom_call.1} parent=0
    _
  %s13 = ssub.s32 1, %s11
  %s14 = scalar_select 0, %s13, %s11
  $region1: #{tpu_custom_call.1} parent=0
    #allocation3 [shape = 'u8[4096]{0}', space=vmem, size = 0x1000, scoped, tag = 'output window, operand 0']
    #allocation4 [shape = 's32[2]{0}', space=sflag, size = 0x8, scoped, tag = 'scoped memory for tpu_custom_call.1']
    %15 = vsyncpa [#allocation4], 0
    %s16 = scalar_lea.sflag [#allocation4], 1
    %17 = vsyncpa %s16, 0
    loop: start=0, step=1, limit=6
    $region2: #{tpu_custom_call.1} parent=1 // loop_pre_header
      _
    $region3: #{tpu_custom_call.1} parent=1 // loop_header
      %s19 = sphi 0, %s23
      %p20 = scmp.ge.s32.totalorder %s19, 6
      %s26 = sphi 0, %s38
      %s27 = sphi 0, %s34
      %s28 = sphi 0, %s26
      %s29 = sphi 0, %s27
      %s30 = sphi 0, %s28
      %s31 = sphi 0, %s29
      %s43 = sphi 0, %s45
      %s46 = sphi 0, %s43
      %s47 = sphi 0, %s46
      %s63 = sphi 0, %s47
      %s73 = sphi 0, %s75
      %s76 = sphi 0, %s73
      %s77 = sphi 0, %s76
      %s93 = sphi 0, %s77
      %s101 = sphi 0, %s103
      %s104 = sphi 0, %s101
      %s105 = sphi 0, %s104
      %s121 = sphi 0, %s105
      %s125 = sphi 0, %s125
      %s127 = sphi 0, %s125
      %s128 = sphi 0, %s127
      %s142 = sphi 0, %s128
      %s146 = sphi 0, %s146
      %s148 = sphi 0, %s146
      %s149 = sphi 0, %s148
      %s163 = sphi 0, %s149
      %s167 = sphi 0, %s167
      %s169 = sphi 0, %s167
      %s170 = sphi 0, %s169
      %s184 = sphi 0, %s170
      %s188 = sphi 0, %s188
      %s190 = sphi 0, %s188
      %s191 = sphi 0, %s190
      %s205 = sphi 0, %s191
      %s209 = sphi 0, %s209
      %s211 = sphi 0, %s209
      %s212 = sphi 0, %s211
      %s226 = sphi 0, %s212
      %s230 = sphi 0, %s230
      %s232 = sphi 0, %s230
      %s233 = sphi 0, %s232
      %s247 = sphi 0, %s233
      %s251 = sphi 0, %s251
      %s253 = sphi 0, %s251
      %s254 = sphi 0, %s253
      %s268 = sphi 0, %s254
      %s276 = sphi 0, %s278
      %s279 = sphi 0, %s276
      %s280 = sphi 0, %s279
      %s296 = sphi 0, %s280
    $region4: #{tpu_custom_call.1} parent=1 // loop_header_branch
      %22 = sbr.rel (%p20) target = $region8
    $region5: #{tpu_custom_call.1} parent=1 // loop_body
      %s24 = ssub.s32 %s19, 1
      %s25 = ssub.s32 %s19, 2
      %s32 = sadd.s32 1, %s27
      %p33 = scmp.ge.s32.totalorder %s32, 2
      %s34 = scalar_select %p33, 0, %s32
      %s35 = sadd.s32 1, %s26
      %s36 = scalar_select %p33, %s35, %s26
      %p37 = scmp.ge.s32.totalorder %s36, 2
      %s38 = scalar_select %p37, 0, %s36
      %s39 = ssub.s32 %s26, %s38
      %s40 = ssub.s32 %s27, %s34
      %s41 = sor.u32 %s39, %s40
      %p42 = scmp.eq.s32.totalorder %s41, 0
      %s44 = sadd.s32 %s43, 1
      %s45 = scalar_select %p42, %s43, %s44
      %p48 = pneg %p42
      %p49 = scmp.eq.s32.totalorder %s19, 3
      %p50 = por %p48, %p49
      %p51 = scmp.ne.s32.totalorder %s43, %s46
      %p52 = scmp.eq.s32.totalorder %s19, 0
      %p53 = por %p51, %p52
      %p54 = scmp.ne.s32.totalorder %s43, %s46
      %p55 = scmp.eq.s32.totalorder %s24, 3
      %p56 = por %p54, %p55
      %p57 = scmp.ne.s32.totalorder %s46, %s47
      %p58 = scmp.eq.s32.totalorder %s24, 0
      %p59 = por %p57, %p58
      %p60 = scmp.ne.s32.totalorder %s46, %s47
      %p61 = scmp.eq.s32.totalorder %s25, 3
      %p62 = por %p60, %p61
      %p64 = scmp.ne.s32.totalorder %s47, %s63
      %p65 = scmp.eq.s32.totalorder %s25, 0
      %p66 = por %p64, %p65
      %s67 = sadd.s32 %s27, 1
      %s68 = sadd.s32 %s34, 1
      %s69 = ssub.s32 %s26, %s38
      %s70 = ssub.s32 %s67, %s68
      %s71 = sor.u32 %s69, %s70
      %p72 = scmp.eq.s32.totalorder %s71, 0
      %s74 = sadd.s32 %s73, 1
      %s75 = scalar_select %p72, %s73, %s74
      %p78 = pneg %p72
      %p79 = scmp.eq.s32.totalorder %s19, 3
      %p80 = por %p78, %p79
      %p81 = scmp.ne.s32.totalorder %s73, %s76
      %p82 = scmp.eq.s32.totalorder %s19, 0
      %p83 = por %p81, %p82
      %p84 = scmp.ne.s32.totalorder %s73, %s76
      %p85 = scmp.eq.s32.totalorder %s24, 3
      %p86 = por %p84, %p85
      %p87 = scmp.ne.s32.totalorder %s76, %s77
      %p88 = scmp.eq.s32.totalorder %s24, 0
      %p89 = por %p87, %p88
      %p90 = scmp.ne.s32.totalorder %s76, %s77
      %p91 = scmp.eq.s32.totalorder %s25, 3
      %p92 = por %p90, %p91
      %p94 = scmp.ne.s32.totalorder %s77, %s93
      %p95 = scmp.eq.s32.totalorder %s25, 0
      %p96 = por %p94, %p95
      %s97 = ssub.s32 %s26, %s38
      %s98 = ssub.s32 %s27, %s34
      %s99 = sor.u32 %s97, %s98
      %p100 = scmp.eq.s32.totalorder %s99, 0
      %s102 = sadd.s32 %s101, 1
      %s103 = scalar_select %p100, %s101, %s102
      %p106 = pneg %p100
      %p107 = scmp.eq.s32.totalorder %s19, 3
      %p108 = por %p106, %p107
      %p109 = scmp.ne.s32.totalorder %s101, %s104
      %p110 = scmp.eq.s32.totalorder %s19, 0
      %p111 = por %p109, %p110
      %p112 = scmp.ne.s32.totalorder %s101, %s104
      %p113 = scmp.eq.s32.totalorder %s24, 3
      %p114 = por %p112, %p113
      %p115 = scmp.ne.s32.totalorder %s104, %s105
      %p116 = scmp.eq.s32.totalorder %s24, 0
      %p117 = por %p115, %p116
      %p118 = scmp.ne.s32.totalorder %s104, %s105
      %p119 = scmp.eq.s32.totalorder %s25, 3
      %p120 = por %p118, %p119
      %p122 = scmp.ne.s32.totalorder %s105, %s121
      %p123 = scmp.eq.s32.totalorder %s25, 0
      %p124 = por %p122, %p123
      %s126 = sadd.s32 %s125, 1
      %p129 = scmp.eq.s32.totalorder %s19, 3
      %p130 = scmp.ne.s32.totalorder %s125, %s127
      %p131 = scmp.eq.s32.totalorder %s19, 0
      %p132 = por %p130, %p131
      %p133 = scmp.ne.s32.totalorder %s125, %s127
      %p134 = scmp.eq.s32.totalorder %s24, 3
      %p135 = por %p133, %p134
      %p136 = scmp.ne.s32.totalorder %s127, %s128
      %p137 = scmp.eq.s32.totalorder %s24, 0
      %p138 = por %p136, %p137
      %p139 = scmp.ne.s32.totalorder %s127, %s128
      %p140 = scmp.eq.s32.totalorder %s25, 3
      %p141 = por %p139, %p140
      %p143 = scmp.ne.s32.totalorder %s128, %s142
      %p144 = scmp.eq.s32.totalorder %s25, 0
      %p145 = por %p143, %p144
      %s147 = sadd.s32 %s146, 1
      %p150 = scmp.eq.s32.totalorder %s19, 3
      %p151 = scmp.ne.s32.totalorder %s146, %s148
      %p152 = scmp.eq.s32.totalorder %s19, 0
      %p153 = por %p151, %p152
      %p154 = scmp.ne.s32.totalorder %s146, %s148
      %p155 = scmp.eq.s32.totalorder %s24, 3
      %p156 = por %p154, %p155
      %p157 = scmp.ne.s32.totalorder %s148, %s149
      %p158 = scmp.eq.s32.totalorder %s24, 0
      %p159 = por %p157, %p158
      %p160 = scmp.ne.s32.totalorder %s148, %s149
      %p161 = scmp.eq.s32.totalorder %s25, 3
      %p162 = por %p160, %p161
      %p164 = scmp.ne.s32.totalorder %s149, %s163
      %p165 = scmp.eq.s32.totalorder %s25, 0
      %p166 = por %p164, %p165
      %s168 = sadd.s32 %s167, 1
      %p171 = scmp.eq.s32.totalorder %s19, 3
      %p172 = scmp.ne.s32.totalorder %s167, %s169
      %p173 = scmp.eq.s32.totalorder %s19, 0
      %p174 = por %p172, %p173
      %p175 = scmp.ne.s32.totalorder %s167, %s169
      %p176 = scmp.eq.s32.totalorder %s24, 3
      %p177 = por %p175, %p176
      %p178 = scmp.ne.s32.totalorder %s169, %s170
      %p179 = scmp.eq.s32.totalorder %s24, 0
      %p180 = por %p178, %p179
      %p181 = scmp.ne.s32.totalorder %s169, %s170
      %p182 = scmp.eq.s32.totalorder %s25, 3
      %p183 = por %p181, %p182
      %p185 = scmp.ne.s32.totalorder %s170, %s184
      %p186 = scmp.eq.s32.totalorder %s25, 0
      %p187 = por %p185, %p186
      %s189 = sadd.s32 %s188, 1
      %p192 = scmp.eq.s32.totalorder %s19, 3
      %p193 = scmp.ne.s32.totalorder %s188, %s190
      %p194 = scmp.eq.s32.totalorder %s19, 0
      %p195 = por %p193, %p194
      %p196 = scmp.ne.s32.totalorder %s188, %s190
      %p197 = scmp.eq.s32.totalorder %s24, 3
      %p198 = por %p196, %p197
      %p199 = scmp.ne.s32.totalorder %s190, %s191
      %p200 = scmp.eq.s32.totalorder %s24, 0
      %p201 = por %p199, %p200
      %p202 = scmp.ne.s32.totalorder %s190, %s191
      %p203 = scmp.eq.s32.totalorder %s25, 3
      %p204 = por %p202, %p203
      %p206 = scmp.ne.s32.totalorder %s191, %s205
      %p207 = scmp.eq.s32.totalorder %s25, 0
      %p208 = por %p206, %p207
      %s210 = sadd.s32 %s209, 1
      %p213 = scmp.eq.s32.totalorder %s19, 3
      %p214 = scmp.ne.s32.totalorder %s209, %s211
      %p215 = scmp.eq.s32.totalorder %s19, 0
      %p216 = por %p214, %p215
      %p217 = scmp.ne.s32.totalorder %s209, %s211
      %p218 = scmp.eq.s32.totalorder %s24, 3
      %p219 = por %p217, %p218
      %p220 = scmp.ne.s32.totalorder %s211, %s212
      %p221 = scmp.eq.s32.totalorder %s24, 0
      %p222 = por %p220, %p221
      %p223 = scmp.ne.s32.totalorder %s211, %s212
      %p224 = scmp.eq.s32.totalorder %s25, 3
      %p225 = por %p223, %p224
      %p227 = scmp.ne.s32.totalorder %s212, %s226
      %p228 = scmp.eq.s32.totalorder %s25, 0
      %p229 = por %p227, %p228
      %s231 = sadd.s32 %s230, 1
      %p234 = scmp.eq.s32.totalorder %s19, 3
      %p235 = scmp.ne.s32.totalorder %s230, %s232
      %p236 = scmp.eq.s32.totalorder %s19, 0
      %p237 = por %p235, %p236
      %p238 = scmp.ne.s32.totalorder %s230, %s232
      %p239 = scmp.eq.s32.totalorder %s24, 3
      %p240 = por %p238, %p239
      %p241 = scmp.ne.s32.totalorder %s232, %s233
      %p242 = scmp.eq.s32.totalorder %s24, 0
      %p243 = por %p241, %p242
      %p244 = scmp.ne.s32.totalorder %s232, %s233
      %p245 = scmp.eq.s32.totalorder %s25, 3
      %p246 = por %p244, %p245
      %p248 = scmp.ne.s32.totalorder %s233, %s247
      %p249 = scmp.eq.s32.totalorder %s25, 0
      %p250 = por %p248, %p249
      %s252 = sadd.s32 %s251, 1
      %p255 = scmp.eq.s32.totalorder %s19, 3
      %p256 = scmp.ne.s32.totalorder %s251, %s253
      %p257 = scmp.eq.s32.totalorder %s19, 0
      %p258 = por %p256, %p257
      %p259 = scmp.ne.s32.totalorder %s251, %s253
      %p260 = scmp.eq.s32.totalorder %s24, 3
      %p261 = por %p259, %p260
      %p262 = scmp.ne.s32.totalorder %s253, %s254
      %p263 = scmp.eq.s32.totalorder %s24, 0
      %p264 = por %p262, %p263
      %p265 = scmp.ne.s32.totalorder %s253, %s254
      %p266 = scmp.eq.s32.totalorder %s25, 3
      %p267 = por %p265, %p266
      %p269 = scmp.ne.s32.totalorder %s254, %s268
      %p270 = scmp.eq.s32.totalorder %s25, 0
      %p271 = por %p269, %p270
      %s272 = ssub.s32 %s26, %s38
      %s273 = ssub.s32 %s27, %s34
      %s274 = sor.u32 %s272, %s273
      %p275 = scmp.eq.s32.totalorder %s274, 0
      %s277 = sadd.s32 %s276, 1
      %s278 = scalar_select %p275, %s276, %s277
      %p281 = pneg %p275
      %p282 = scmp.eq.s32.totalorder %s19, 3
      %p283 = por %p281, %p282
      %p284 = scmp.ne.s32.totalorder %s276, %s279
      %p285 = scmp.eq.s32.totalorder %s19, 0
      %p286 = por %p284, %p285
      %p287 = scmp.ne.s32.totalorder %s276, %s279
      %p288 = scmp.eq.s32.totalorder %s24, 3
      %p289 = por %p287, %p288
      %p290 = scmp.ne.s32.totalorder %s279, %s280
      %p291 = scmp.eq.s32.totalorder %s24, 0
      %p292 = por %p290, %p291
      %p293 = scmp.ne.s32.totalorder %s279, %s280
      %p294 = scmp.eq.s32.totalorder %s25, 3
      %p295 = por %p293, %p294
      %p297 = scmp.ne.s32.totalorder %s280, %s296
      %p298 = scmp.eq.s32.totalorder %s25, 0
      %p299 = por %p297, %p298
      %p300 = scmp.le.s32.totalorder 1, %s19
      %p301 = scmp.lt.s32.totalorder %s19, 5
      %p302 = pnand %p300, %p301
      %p303 = pneg %p302
      // Predicated region
      $region9: #{tpu_custom_call.1} parent=5 // pred_check
        _
      $region10: #{tpu_custom_call.1} parent=5 // pred_check_branch
        %305 = sbr.rel (%p302) target = $region12
      $region11: #{tpu_custom_call.1} parent=5 // pred_region
        %s306 = ssub.s32 %s19, 1
        // Predicated region
        $region13: #{tpu_custom_call.1} parent=11 // pred_check
          %p307 = pneg %p138
        $region14: #{tpu_custom_call.1} parent=11 // pred_check_branch
          %309 = sbr.rel (%p307) target = $region16
        $region15: #{tpu_custom_call.1} parent=11 // pred_region
          _
        $region16: #{tpu_custom_call.1} parent=11 // pred_fallthru
          _
        // Predicated region
        $region17: #{tpu_custom_call.1} parent=11 // pred_check
          %p310 = pneg %p159
        $region18: #{tpu_custom_call.1} parent=11 // pred_check_branch
          %312 = sbr.rel (%p310) target = $region20
        $region19: #{tpu_custom_call.1} parent=11 // pred_region
          _
        $region20: #{tpu_custom_call.1} parent=11 // pred_fallthru
          _
        // Predicated region
        $region21: #{tpu_custom_call.1} parent=11 // pred_check
          %p313 = pneg %p180
        $region22: #{tpu_custom_call.1} parent=11 // pred_check_branch
          %315 = sbr.rel (%p313) target = $region24
        $region23: #{tpu_custom_call.1} parent=11 // pred_region
          _
        $region24: #{tpu_custom_call.1} parent=11 // pred_fallthru
          _
        // Predicated region
        $region25: #{tpu_custom_call.1} parent=11 // pred_check
          %p316 = pneg %p201
        $region26: #{tpu_custom_call.1} parent=11 // pred_check_branch
          %318 = sbr.rel (%p316) target = $region28
        $region27: #{tpu_custom_call.1} parent=11 // pred_region
          _
        $region28: #{tpu_custom_call.1} parent=11 // pred_fallthru
          _
        // Predicated region
        $region29: #{tpu_custom_call.1} parent=11 // pred_check
          %p319 = pneg %p222
        $region30: #{tpu_custom_call.1} parent=11 // pred_check_branch
          %321 = sbr.rel (%p319) target = $region32
        $region31: #{tpu_custom_call.1} parent=11 // pred_region
          _
        $region32: #{tpu_custom_call.1} parent=11 // pred_fallthru
          _
        // Predicated region
        $region33: #{tpu_custom_call.1} parent=11 // pred_check
          %p322 = pneg %p243
        $region34: #{tpu_custom_call.1} parent=11 // pred_check_branch
          %324 = sbr.rel (%p322) target = $region36
        $region35: #{tpu_custom_call.1} parent=11 // pred_region
          _
        $region36: #{tpu_custom_call.1} parent=11 // pred_fallthru
          _
        // Predicated region
        $region37: #{tpu_custom_call.1} parent=11 // pred_check
          %p325 = pneg %p264
        $region38: #{tpu_custom_call.1} parent=11 // pred_check_branch
          %327 = sbr.rel (%p325) target = $region40
        $region39: #{tpu_custom_call.1} parent=11 // pred_region
          _
        $region40: #{tpu_custom_call.1} parent=11 // pred_fallthru
          _
      $region12: #{tpu_custom_call.1} parent=5 // pred_fallthru
        _
      %p328 = scmp.lt.s32.totalorder %s19, 4
      // Predicated region
      $region41: #{tpu_custom_call.1} parent=5 // pred_check
        %p329 = pneg %p328
      $region42: #{tpu_custom_call.1} parent=5 // pred_check_branch
        %331 = sbr.rel (%p329) target = $region44
      $region43: #{tpu_custom_call.1} parent=5 // pred_region
        // Predicated region
        $region45: #{tpu_custom_call.1} parent=43 // pred_check
          %p332 = pneg %p53
        $region46: #{tpu_custom_call.1} parent=43 // pred_check_branch
          %334 = sbr.rel (%p332) target = $region48
        $region47: #{tpu_custom_call.1} parent=43 // pred_region
          %s335 = smul.u32 2, %s27
          %p336 = scmp.lt.s32.totalorder %s26, 1
          %s337 = scalar_select %p336, %s26, 1
          %p338 = scmp.lt.s32.totalorder %s335, 5
          %s339 = scalar_select %p338, %s335, 5
          %s340 = smul.addr %s337, 6
          %s341 = sadd.s32 %s339, %s340
          %s342 = smul.addr %s341, 2
          %s343 = scalar_lea.vmem %s0, %s342
          %s344 = smul.u32 2, %s27
        $region48: #{tpu_custom_call.1} parent=43 // pred_fallthru
          _
        // Predicated region
        $region49: #{tpu_custom_call.1} parent=43 // pred_check
          %p345 = pneg %p83
        $region50: #{tpu_custom_call.1} parent=43 // pred_check_branch
          %347 = sbr.rel (%p345) target = $region52
        $region51: #{tpu_custom_call.1} parent=43 // pred_region
          %s348 = sadd.s32 %s27, 1
          %s349 = smul.u32 2, %s348
          %p350 = scmp.lt.s32.totalorder %s26, 1
          %s351 = scalar_select %p350, %s26, 1
          %p352 = scmp.lt.s32.totalorder %s349, 5
          %s353 = scalar_select %p352, %s349, 5
          %s354 = smul.addr %s351, 6
          %s355 = sadd.s32 %s353, %s354
          %s356 = smul.addr %s355, 2
          %s357 = scalar_lea.vmem %s1, %s356
          %s358 = sadd.s32 %s27, 1
          %s359 = smul.u32 2, %s358
        $region52: #{tpu_custom_call.1} parent=43 // pred_fallthru
          _
        // Predicated region
        $region53: #{tpu_custom_call.1} parent=43 // pred_check
          %p360 = pneg %p111
        $region54: #{tpu_custom_call.1} parent=43 // pred_check_branch
          %362 = sbr.rel (%p360) target = $region56
        $region55: #{tpu_custom_call.1} parent=43 // pred_region
          %s363 = smul.u32 2, %s27
          %p364 = scmp.lt.s32.totalorder %s26, 1
          %s365 = scalar_select %p364, %s26, 1
          %p366 = scmp.lt.s32.totalorder %s363, 3
          %s367 = scalar_select %p366, %s363, 3
          %s368 = smul.addr %s365, 4
          %s369 = sadd.s32 %s367, %s368
          %s370 = smul.addr %s369, 2
          %s371 = scalar_lea.vmem %s2, %s370
          %s372 = smul.u32 2, %s27
        $region56: #{tpu_custom_call.1} parent=43 // pred_fallthru
          _
      $region44: #{tpu_custom_call.1} parent=5 // pred_fallthru
        _
      %p373 = scmp.le.s32.totalorder 1, %s19
      %p374 = scmp.lt.s32.totalorder %s19, 5
      %p375 = pnand %p373, %p374
      %p376 = pneg %p375
      // Predicated region
      $region57: #{tpu_custom_call.1} parent=5 // pred_check
        _
      $region58: #{tpu_custom_call.1} parent=5 // pred_check_branch
        %378 = sbr.rel (%p375) target = $region60
      $region59: #{tpu_custom_call.1} parent=5 // pred_region
        %s379 = ssub.s32 %s19, 1
        %s380 = smul.u32 2, %s29
        %p381 = scmp.lt.s32.totalorder %s28, 1
        %s382 = scalar_select %p381, %s28, 1
        %p383 = scmp.lt.s32.totalorder %s380, 5
        %s384 = scalar_select %p383, %s380, 5
        %s385 = smul.addr %s382, 6
        %s386 = sadd.s32 %s384, %s385
        %s387 = smul.addr %s386, 2
        %s388 = scalar_lea.vmem %s0, %s387
        %p389 = pneg %p59
        %p390 = pneg %p56
        %s391 = sadd.s32 %s29, 1
        %s392 = smul.u32 2, %s391
        %p393 = scmp.lt.s32.totalorder %s28, 1
        %s394 = scalar_select %p393, %s28, 1
        %p395 = scmp.lt.s32.totalorder %s392, 5
        %s396 = scalar_select %p395, %s392, 5
        %s397 = smul.addr %s394, 6
        %s398 = sadd.s32 %s396, %s397
        %s399 = smul.addr %s398, 2
        %s400 = scalar_lea.vmem %s1, %s399
        %p401 = pneg %p89
        %p402 = pneg %p86
        %s403 = smul.u32 2, %s29
        %p404 = scmp.lt.s32.totalorder %s28, 1
        %s405 = scalar_select %p404, %s28, 1
        %p406 = scmp.lt.s32.totalorder %s403, 3
        %s407 = scalar_select %p406, %s403, 3
        %s408 = smul.addr %s405, 4
        %s409 = sadd.s32 %s407, %s408
        %s410 = smul.addr %s409, 2
        %s411 = scalar_lea.vmem %s2, %s410
        %p412 = pneg %p117
        %p413 = pneg %p114
        %p414 = pneg %p138
        %p415 = pneg %p135
        %p416 = pneg %p159
        %p417 = pneg %p156
        %p418 = pneg %p180
        %p419 = pneg %p177
        %p420 = pneg %p201
        %p421 = pneg %p198
        %p422 = pneg %p222
        %p423 = pneg %p219
        %p424 = pneg %p243
        %p425 = pneg %p240
        %p426 = pneg %p264
        %p427 = pneg %p261
        %p428 = pneg %p292
        %p429 = pneg %p289
        %s430 = sand.u32 %s279, 1
        %s431 = scalar_lea.sflag [#allocation4], %s430
        %s432 = sand.u32 %s279, 1
        %s433 = smul.addr %s432, 4
        %s434 = scalar_lea.vmem [#allocation3], %s433
        %s435 = smul.u32 2, %s29
        %p436 = scmp.lt.s32.totalorder %s28, 1
        %s437 = scalar_select %p436, %s28, 1
        %p438 = scmp.lt.s32.totalorder %s435, 5
        %s439 = scalar_select %p438, %s435, 5
        %s440 = smul.addr %s437, 6
        %s441 = sadd.s32 %s439, %s440
        %s442 = smul.addr %s441, 2
        %s443 = scalar_lea.vmem %s0, %s442
        %s444 = smul.u32 2, %s29
        %s445 = sadd.s32 %s29, 1
        %s446 = smul.u32 2, %s445
        %p447 = scmp.lt.s32.totalorder %s28, 1
        %s448 = scalar_select %p447, %s28, 1
        %p449 = scmp.lt.s32.totalorder %s446, 5
        %s450 = scalar_select %p449, %s446, 5
        %s451 = smul.addr %s448, 6
        %s452 = sadd.s32 %s450, %s451
        %s453 = smul.addr %s452, 2
        %s454 = scalar_lea.vmem %s1, %s453
        %s455 = sadd.s32 %s29, 1
        %s456 = smul.u32 2, %s455
        %s457 = smul.u32 2, %s29
        %p458 = scmp.lt.s32.totalorder %s28, 1
        %s459 = scalar_select %p458, %s28, 1
        %p460 = scmp.lt.s32.totalorder %s457, 3
        %s461 = scalar_select %p460, %s457, 3
        %s462 = smul.addr %s459, 4
        %s463 = sadd.s32 %s461, %s462
        %s464 = smul.addr %s463, 2
        %s465 = scalar_lea.vmem %s2, %s464
        %s466 = smul.u32 2, %s29
        %s467 = smul.u32 2, %s29
        %v470 = vld [vmem:[%s443] sm:$0xf]
        %v471 = vld [vmem:[%s454] sm:$0x3]
        %473 = vst [vmem:[#allocation1] ss:$4 sm:$0xff] %v470
        %v474 = vld.sshfl [vmem:[#allocation1] sm:$0xff pattern:$0x73625140]
        %v476 = vld.sshfl [vmem:[#allocation1 + $0x8] sm:$0xff pattern:$0x73625140]
        %v478 = vunpack.c.l.b16 %v474
        %v479 = vunpack.c.l.b16 %v476
        %v480 = vpack.c.b16 %v479, %v478
        %482 = vst [vmem:[#allocation2] sm:$0x33] %v480
        %v484 = vunpack.c.l.b16 %v471
        %v485 = vpack.c.b16 %v484, %v484
        %v486 = vrot.slane %v480, 6
        %v487 = vrot.slane %v485, 6
        %488 = vrot.lane.b32.xlu0 %v486, 127
        %v489 = vpop.permute.xlu0 %488
        %490 = vrot.lane.b32.xlu0 %v487, 127
        %v491 = vpop.permute.xlu0 %490
        %v492 = vrot.slane %v489, 4
        %v493 = vrot.slane %v491, 4
        %vm494 = vcmask 1043456
        %v495 = vsel %vm494, %v492, %v493
        %vm496 = vcmask 1039360
        %v497 = vsel %vm496, %v489, %v495
        %499 = vst [vmem:[#allocation2] sm:$0xcc] %v497
        %500 = vrot.lane.b32.xlu0 %v480, 126
        %v501 = vpop.permute.xlu0 %500
        %502 = vrot.lane.b32.xlu0 %v485, 126
        %v503 = vpop.permute.xlu0 %502
        %v504 = vrot.slane %v501, 4
        %v505 = vrot.slane %v503, 4
        %v506 = vsel %vm494, %v504, %v505
        %vm507 = vcmask 1031168
        %v508 = vsel %vm507, %v501, %v506
        %510 = vst [vmem:[#allocation2 + $0x8] sm:$0x33] %v508
        %511 = vrot.lane.b32.xlu0 %v486, 110
        %v512 = vpop.permute.xlu0 %511
        %513 = vrot.lane.b32.xlu0 %v487, 110
        %v514 = vpop.permute.xlu0 %513
        %v515 = vrot.slane %v512, 4
        %v516 = vrot.slane %v514, 4
        %v517 = vsel %vm494, %v515, %v516
        %vm518 = vcmask 900096
        %v519 = vsel %vm518, %v512, %v517
        %521 = vst [vmem:[#allocation2 + $0x8] sm:$0xcc] %v519
        %522 = vrot.lane.b32.xlu0 %v480, 109
        %v523 = vpop.permute.xlu0 %522
        %524 = vrot.lane.b32.xlu0 %v485, 109
        %v525 = vpop.permute.xlu0 %524
        %v526 = vrot.slane %v523, 4
        %v527 = vrot.slane %v525, 4
        %v528 = vsel %vm494, %v526, %v527
        %vm529 = vcmask 891904
        %v530 = vsel %vm529, %v523, %v528
        %532 = vst [vmem:[#allocation2 + $0x10] sm:$0x33] %v530
        %533 = vrot.lane.b32.xlu0 %v486, 108
        %v534 = vpop.permute.xlu0 %533
        %535 = vrot.lane.b32.xlu0 %v487, 108
        %v536 = vpop.permute.xlu0 %535
        %v537 = vrot.slane %v534, 4
        %v538 = vrot.slane %v536, 4
        %v539 = vsel %vm494, %v537, %v538
        %vm540 = vcmask 883712
        %v541 = vsel %vm540, %v534, %v539
        %543 = vst [vmem:[#allocation2 + $0x10] sm:$0xcc] %v541
        %544 = vrot.lane.b32.xlu0 %v480, 92
        %v545 = vpop.permute.xlu0 %544
        %546 = vrot.lane.b32.xlu0 %v485, 92
        %v547 = vpop.permute.xlu0 %546
        %v548 = vrot.slane %v545, 4
        %v549 = vrot.slane %v547, 4
        %v550 = vsel %vm494, %v548, %v549
        %vm551 = vcmask 752640
        %v552 = vsel %vm551, %v545, %v550
        %554 = vst [vmem:[#allocation2 + $0x18] sm:$0x33] %v552
        %555 = vrot.lane.b32.xlu0 %v486, 91
        %v556 = vpop.permute.xlu0 %555
        %557 = vrot.lane.b32.xlu0 %v487, 91
        %v558 = vpop.permute.xlu0 %557
        %v559 = vrot.slane %v556, 4
        %v560 = vrot.slane %v558, 4
        %v561 = vsel %vm494, %v559, %v560
        %vm562 = vcmask 744448
        %v563 = vsel %vm562, %v556, %v561
        %565 = vst [vmem:[#allocation2 + $0x18] sm:$0xcc] %v563
        %566 = vrot.lane.b32.xlu0 %v480, 90
        %v567 = vpop.permute.xlu0 %566
        %568 = vrot.lane.b32.xlu0 %v485, 90
        %v569 = vpop.permute.xlu0 %568
        %v570 = vrot.slane %v567, 4
        %v571 = vrot.slane %v569, 4
        %v572 = vsel %vm494, %v570, %v571
        %vm573 = vcmask 736256
        %v574 = vsel %vm573, %v567, %v572
        %576 = vst [vmem:[#allocation2 + $0x20] sm:$0x33] %v574
        %vm577 = vcmask 1042434
        %vm578 = vsmask.f32 2304
        %vm579 = vmand %vm577, %vm578
        %vm580 = vcmask 1046534
        %vm581 = vsmask.f32 6400
        %vm582 = vmand %vm580, %vm581
        %vm583 = vmor %vm582, %vm579
        %v584 = vld [vmem:[#allocation2 + $0x20] sm:$0x44]
        %v585 = vsel %vm583, 1065369472, %v584
        %586 = vst [vmem:[#allocation2 + $0x20] sm:$0x44] %v585
        %vm587 = vcmask 1043458
        %vm588 = vsmask.f32 7946
        %vm589 = vmand %vm587, %vm588
        %vm590 = vcmask 1047558
        %vm591 = vsmask.f32 7962
        %vm592 = vmand %vm590, %vm591
        %vm593 = vmor %vm592, %vm589
        %v594 = vld [vmem:[#allocation2 + $0x20] sm:$0xcc]
        %v595 = vsel %vm593, 0, %v594
        %596 = vst [vmem:[#allocation2 + $0x20] sm:$0xcc] %v595
        %597 = vst [vmem:[#allocation2 + $0x28] sm:$0xff] 0
        %v598 = vld [vmem:[%s3] sm:$0xf]
        %v599 = vld [vmem:[%s3 + $0x4] sm:$0xf]
        %v600 = vld [vmem:[%s3 + $0x8] sm:$0xf]
        %v601 = vld [vmem:[%s3 + $0xc] sm:$0xf]
        %v602 = vld [vmem:[%s3 + $0x10] sm:$0xf]
        %v603 = vld [vmem:[%s3 + $0x14] sm:$0xf]
        %v604 = vld [vmem:[%s3 + $0x18] sm:$0xf]
        %v605 = vld [vmem:[%s3 + $0x1c] sm:$0xf]
        %v606 = vld [vmem:[%s3 + $0x20] sm:$0xf]
        %v607 = vld [vmem:[%s3 + $0x24] sm:$0xf]
        %v608 = vld [vmem:[%s3 + $0x28] sm:$0xf]
        %v609 = vld [vmem:[%s3 + $0x2c] sm:$0xf]
        %v610 = vld [vmem:[%s3 + $0x30] sm:$0xf]
        %v611 = vld [vmem:[%s3 + $0x34] sm:$0xf]
        %v612 = vld [vmem:[%s3 + $0x38] sm:$0xf]
        %v613 = vld [vmem:[%s3 + $0x3c] sm:$0xf]
        %v614 = vld [vmem:[#allocation2] sm:$0xff]
        %v615 = vld [vmem:[#allocation2 + $0x8] sm:$0xff]
        %v616 = vld [vmem:[#allocation2 + $0x10] sm:$0xff]
        %v617 = vld [vmem:[#allocation2 + $0x18] sm:$0xff]
        %v618 = vld [vmem:[#allocation2 + $0x20] sm:$0xff]
        %v619 = vld [vmem:[#allocation2 + $0x28] sm:$0xff]
        %v636 = vunpack.c.l.b16 %v598
        %v637 = vunpack.c.l.b16 %v599
        %v638 = vunpack.c.l.b16 %v600
        %v639 = vunpack.c.l.b16 %v601
        %v640 = vunpack.c.l.b16 %v602
        %v641 = vunpack.c.l.b16 %v603
        %v642 = vunpack.c.l.b16 %v604
        %v643 = vunpack.c.l.b16 %v605
        %v644 = vunpack.c.l.b16 %v606
        %v645 = vunpack.c.l.b16 %v607
        %v646 = vunpack.c.l.b16 %v608
        %v647 = vunpack.c.l.b16 %v609
        %v648 = vunpack.c.l.b16 %v610
        %v649 = vunpack.c.l.b16 %v611
        %v650 = vunpack.c.l.b16 %v612
        %v651 = vunpack.c.l.b16 %v613
        %v652 = vpack.c.b16 %v637, %v636
        %v653 = vpack.c.b16 %v639, %v638
        %v654 = vpack.c.b16 %v641, %v640
        %v655 = vpack.c.b16 %v643, %v642
        %v656 = vpack.c.b16 %v645, %v644
        %v657 = vpack.c.b16 %v647, %v646
        %v658 = vpack.c.b16 %v649, %v648
        %v659 = vpack.c.b16 %v651, %v650
        %v666 = vunpack.c.l.b16 %v614
        %v667 = vunpack.c.h.b16 %v614
        %v668 = vunpack.c.l.b16 %v615
        %v669 = vunpack.c.h.b16 %v615
        %v670 = vunpack.c.l.b16 %v616
        %v671 = vunpack.c.h.b16 %v616
        %v672 = vunpack.c.l.b16 %v617
        %v673 = vunpack.c.h.b16 %v617
        %v674 = vunpack.c.l.b16 %v618
        %v675 = vunpack.c.h.b16 %v618
        %v676 = vunpack.c.l.b16 %v619
        %v677 = vunpack.c.h.b16 %v619
        %v678 = vpack.c.b16 %v668, %v666
        %v679 = vpack.c.b16 %v669, %v667
        %v680 = vpack.c.b16 %v672, %v670
        %v681 = vpack.c.b16 %v673, %v671
        %v682 = vpack.c.b16 %v676, %v674
        %v683 = vpack.c.b16 %v677, %v675
        %vm690 = vcmask 392192
        %v692 = vsel %vm690, %v652, 0
        %v695 = vsel %vm690, %v653, 0
        %v698 = vsel %vm690, %v654, 0
        %v701 = vsel %vm690, %v655, 0
        %v704 = vsel %vm690, %v656, 0
        %v707 = vsel %vm690, %v657, 0
        %v710 = vsel %vm690, %v658, 0
        %v713 = vsel %vm690, %v659, 0
        %715 = vmatpush.bf16.msra.mxu0 0
        %716 = vmatpush.bf16.msra.mxu0 0
        %717 = vmatpush.bf16.msra.mxu0 0
        %718 = vmatpush.bf16.msra.mxu0 0
        %719 = vmatpush.bf16.msra.mxu0 0
        %720 = vmatpush.bf16.msra.mxu0 %v682
        %721 = vmatpush.bf16.msra.mxu0 %v680
        %722 = vmatpush.bf16.msra.mxu0 %v678
        %723 = vmatmul.bf16.gmra.mxu0 %v692
        %v724 = vpop.f32.mrf.mxu0
        %v725 = vadd.f32 0.0, %v724
        %v726 = vpop.f32.mrf.mxu0
        %v727 = vadd.f32 0.0, %v726
        %728 = vmatmul.bf16.gmra.mxu0 %v695
        %v729 = vpop.f32.mrf.mxu0
        %v730 = vadd.f32 0.0, %v729
        %v731 = vpop.f32.mrf.mxu0
        %v732 = vadd.f32 0.0, %v731
        %733 = vmatmul.bf16.gmra.mxu0 %v698
        %v734 = vpop.f32.mrf.mxu0
        %v735 = vadd.f32 0.0, %v734
        %v736 = vpop.f32.mrf.mxu0
        %v737 = vadd.f32 0.0, %v736
        %738 = vmatmul.bf16.gmra.mxu0 %v701
        %v739 = vpop.f32.mrf.mxu0
        %v740 = vadd.f32 0.0, %v739
        %v741 = vpop.f32.mrf.mxu0
        %v742 = vadd.f32 0.0, %v741
        %743 = vmatmul.bf16.gmra.mxu0 %v704
        %v744 = vpop.f32.mrf.mxu0
        %v745 = vadd.f32 0.0, %v744
        %v746 = vpop.f32.mrf.mxu0
        %v747 = vadd.f32 0.0, %v746
        %748 = vmatmul.bf16.gmra.mxu0 %v707
        %v749 = vpop.f32.mrf.mxu0
        %v750 = vadd.f32 0.0, %v749
        %v751 = vpop.f32.mrf.mxu0
        %v752 = vadd.f32 0.0, %v751
        %753 = vmatmul.bf16.gmra.mxu0 %v710
        %v754 = vpop.f32.mrf.mxu0
        %v755 = vadd.f32 0.0, %v754
        %v756 = vpop.f32.mrf.mxu0
        %v757 = vadd.f32 0.0, %v756
        %758 = vmatmul.bf16.gmra.mxu0 %v713
        %v759 = vpop.f32.mrf.mxu0
        %v760 = vadd.f32 0.0, %v759
        %v761 = vpop.f32.mrf.mxu0
        %v762 = vadd.f32 0.0, %v761
        %763 = vdwg.mxu0
        %764 = vmatpush.bf16.msra.mxu0 0
        %765 = vmatpush.bf16.msra.mxu0 0
        %766 = vmatpush.bf16.msra.mxu0 0
        %767 = vmatpush.bf16.msra.mxu0 0
        %768 = vmatpush.bf16.msra.mxu0 0
        %769 = vmatpush.bf16.msra.mxu0 %v683
        %770 = vmatpush.bf16.msra.mxu0 %v681
        %771 = vmatpush.bf16.msra.mxu0 %v679
        %772 = vmatmul.bf16.gmra.mxu0 %v692
        %v773 = vpop.f32.mrf.mxu0
        %v774 = vadd.f32 0.0, %v773
        %v775 = vpop.f32.mrf.mxu0
        %v776 = vadd.f32 0.0, %v775
        %777 = vmatmul.bf16.gmra.mxu0 %v695
        %v778 = vpop.f32.mrf.mxu0
        %v779 = vadd.f32 0.0, %v778
        %v780 = vpop.f32.mrf.mxu0
        %v781 = vadd.f32 0.0, %v780
        %782 = vmatmul.bf16.gmra.mxu0 %v698
        %v783 = vpop.f32.mrf.mxu0
        %v784 = vadd.f32 0.0, %v783
        %v785 = vpop.f32.mrf.mxu0
        %v786 = vadd.f32 0.0, %v785
        %787 = vmatmul.bf16.gmra.mxu0 %v701
        %v788 = vpop.f32.mrf.mxu0
        %v789 = vadd.f32 0.0, %v788
        %v790 = vpop.f32.mrf.mxu0
        %v791 = vadd.f32 0.0, %v790
        %792 = vmatmul.bf16.gmra.mxu0 %v704
        %v793 = vpop.f32.mrf.mxu0
        %v794 = vadd.f32 0.0, %v793
        %v795 = vpop.f32.mrf.mxu0
        %v796 = vadd.f32 0.0, %v795
        %797 = vmatmul.bf16.gmra.mxu0 %v707
        %v798 = vpop.f32.mrf.mxu0
        %v799 = vadd.f32 0.0, %v798
        %v800 = vpop.f32.mrf.mxu0
        %v801 = vadd.f32 0.0, %v800
        %802 = vmatmul.bf16.gmra.mxu0 %v710
        %v803 = vpop.f32.mrf.mxu0
        %v804 = vadd.f32 0.0, %v803
        %v805 = vpop.f32.mrf.mxu0
        %v806 = vadd.f32 0.0, %v805
        %807 = vmatmul.bf16.gmra.mxu0 %v713
        %v808 = vpop.f32.mrf.mxu0
        %v809 = vadd.f32 0.0, %v808
        %v810 = vpop.f32.mrf.mxu0
        %v811 = vadd.f32 0.0, %v810
        %812 = vdwg.mxu0
        %v813 = vmax.f32 %v725, 0.0
        %v814 = vmax.f32 %v774, 0.0
        %v815 = vmax.f32 %v727, 0.0
        %v816 = vmax.f32 %v776, 0.0
        %v817 = vmax.f32 %v730, 0.0
        %v818 = vmax.f32 %v779, 0.0
        %v819 = vmax.f32 %v732, 0.0
        %v820 = vmax.f32 %v781, 0.0
        %v821 = vmax.f32 %v735, 0.0
        %v822 = vmax.f32 %v784, 0.0
        %v823 = vmax.f32 %v737, 0.0
        %v824 = vmax.f32 %v786, 0.0
        %v825 = vmax.f32 %v740, 0.0
        %v826 = vmax.f32 %v789, 0.0
        %v827 = vmax.f32 %v742, 0.0
        %v828 = vmax.f32 %v791, 0.0
        %v829 = vmax.f32 %v745, 0.0
        %v830 = vmax.f32 %v794, 0.0
        %v831 = vmax.f32 %v747, 0.0
        %v832 = vmax.f32 %v796, 0.0
        %v833 = vmax.f32 %v750, 0.0
        %v834 = vmax.f32 %v799, 0.0
        %v835 = vmax.f32 %v752, 0.0
        %v836 = vmax.f32 %v801, 0.0
        %v837 = vmax.f32 %v755, 0.0
        %v838 = vmax.f32 %v804, 0.0
        %v839 = vmax.f32 %v757, 0.0
        %v840 = vmax.f32 %v806, 0.0
        %v841 = vmax.f32 %v760, 0.0
        %v842 = vmax.f32 %v809, 0.0
        %v843 = vmax.f32 %v762, 0.0
        %v844 = vmax.f32 %v811, 0.0
        %v845 = vpack.c.bf16 %v815, %v813
        %v846 = vpack.c.bf16 %v816, %v814
        %v847 = vpack.c.bf16 %v819, %v817
        %v848 = vpack.c.bf16 %v820, %v818
        %v849 = vpack.c.bf16 %v823, %v821
        %v850 = vpack.c.bf16 %v824, %v822
        %v851 = vpack.c.bf16 %v827, %v825
        %v852 = vpack.c.bf16 %v828, %v826
        %v853 = vpack.c.bf16 %v831, %v829
        %v854 = vpack.c.bf16 %v832, %v830
        %v855 = vpack.c.bf16 %v835, %v833
        %v856 = vpack.c.bf16 %v836, %v834
        %v857 = vpack.c.bf16 %v839, %v837
        %v858 = vpack.c.bf16 %v840, %v838
        %v859 = vpack.c.bf16 %v843, %v841
        %v860 = vpack.c.bf16 %v844, %v842
        %v861 = vld [vmem:[%s4] sm:$0xf]
        %v862 = vld [vmem:[%s4 + $0x4] sm:$0xf]
        %v863 = vld [vmem:[%s4 + $0x8] sm:$0xf]
        %v864 = vld [vmem:[%s4 + $0xc] sm:$0xf]
        %v865 = vld [vmem:[%s4 + $0x10] sm:$0xf]
        %v866 = vld [vmem:[%s4 + $0x14] sm:$0xf]
        %v867 = vld [vmem:[%s4 + $0x18] sm:$0xf]
        %v868 = vld [vmem:[%s4 + $0x1c] sm:$0xf]
        %v869 = vld [vmem:[%s4 + $0x20] sm:$0xf]
        %v870 = vld [vmem:[%s4 + $0x24] sm:$0xf]
        %v871 = vld [vmem:[%s4 + $0x28] sm:$0xf]
        %v872 = vld [vmem:[%s4 + $0x2c] sm:$0xf]
        %v873 = vld [vmem:[%s4 + $0x30] sm:$0xf]
        %v874 = vld [vmem:[%s4 + $0x34] sm:$0xf]
        %v875 = vld [vmem:[%s4 + $0x38] sm:$0xf]
        %v876 = vld [vmem:[%s4 + $0x3c] sm:$0xf]
        %v877 = vld [vmem:[%s5] sm:$0xff]
        %v878 = vld [vmem:[%s5 + $0x8] sm:$0xff]
        %v879 = vld [vmem:[%s5 + $0x10] sm:$0xff]
        %v880 = vld [vmem:[%s5 + $0x18] sm:$0xff]
        %v881 = vld [vmem:[%s5 + $0x20] sm:$0xff]
        %v882 = vld [vmem:[%s5 + $0x28] sm:$0xff]
        %v883 = vld [vmem:[%s5 + $0x30] sm:$0xff]
        %v884 = vld [vmem:[%s5 + $0x38] sm:$0xff]
        %v885 = vld [vmem:[%s5 + $0x40] sm:$0xff]
        %v886 = vld [vmem:[%s5 + $0x48] sm:$0xff]
        %v887 = vld [vmem:[%s5 + $0x50] sm:$0xff]
        %v888 = vld [vmem:[%s5 + $0x58] sm:$0xff]
        %v889 = vld [vmem:[%s5 + $0x60] sm:$0xff]
        %v890 = vld [vmem:[%s5 + $0x68] sm:$0xff]
        %v891 = vld [vmem:[%s5 + $0x70] sm:$0xff]
        %v892 = vld [vmem:[%s5 + $0x78] sm:$0xff]
        %894 = vset.pattern.permute.xlu0 0
        %895 = vperm.xlu0 %894, %v877
        %v896 = vpop.permute.xlu0 %895
        %899 = vset.pattern.permute.xlu0 0
        %900 = vperm.xlu0 %899, %v878
        %v901 = vpop.permute.xlu0 %900
        %904 = vset.pattern.permute.xlu0 0
        %905 = vperm.xlu0 %904, %v879
        %v906 = vpop.permute.xlu0 %905
        %909 = vset.pattern.permute.xlu0 0
        %910 = vperm.xlu0 %909, %v880
        %v911 = vpop.permute.xlu0 %910
        %914 = vset.pattern.permute.xlu0 0
        %915 = vperm.xlu0 %914, %v881
        %v916 = vpop.permute.xlu0 %915
        %919 = vset.pattern.permute.xlu0 0
        %920 = vperm.xlu0 %919, %v882
        %v921 = vpop.permute.xlu0 %920
        %924 = vset.pattern.permute.xlu0 0
        %925 = vperm.xlu0 %924, %v883
        %v926 = vpop.permute.xlu0 %925
        %929 = vset.pattern.permute.xlu0 0
        %930 = vperm.xlu0 %929, %v884
        %v931 = vpop.permute.xlu0 %930
        %934 = vset.pattern.permute.xlu0 0
        %935 = vperm.xlu0 %934, %v885
        %v936 = vpop.permute.xlu0 %935
        %939 = vset.pattern.permute.xlu0 0
        %940 = vperm.xlu0 %939, %v886
        %v941 = vpop.permute.xlu0 %940
        %944 = vset.pattern.permute.xlu0 0
        %945 = vperm.xlu0 %944, %v887
        %v946 = vpop.permute.xlu0 %945
        %949 = vset.pattern.permute.xlu0 0
        %950 = vperm.xlu0 %949, %v888
        %v951 = vpop.permute.xlu0 %950
        %954 = vset.pattern.permute.xlu0 0
        %955 = vperm.xlu0 %954, %v889
        %v956 = vpop.permute.xlu0 %955
        %959 = vset.pattern.permute.xlu0 0
        %960 = vperm.xlu0 %959, %v890
        %v961 = vpop.permute.xlu0 %960
        %964 = vset.pattern.permute.xlu0 0
        %965 = vperm.xlu0 %964, %v891
        %v966 = vpop.permute.xlu0 %965
        %969 = vset.pattern.permute.xlu0 0
        %970 = vperm.xlu0 %969, %v892
        %v971 = vpop.permute.xlu0 %970
        %v989 = vunpack.c.l.b16 %v861
        %v990 = vunpack.c.l.b16 %v862
        %v991 = vunpack.c.l.b16 %v863
        %v992 = vunpack.c.l.b16 %v864
        %v993 = vunpack.c.l.b16 %v865
        %v994 = vunpack.c.l.b16 %v866
        %v995 = vunpack.c.l.b16 %v867
        %v996 = vunpack.c.l.b16 %v868
        %v997 = vunpack.c.l.b16 %v869
        %v998 = vunpack.c.l.b16 %v870
        %v999 = vunpack.c.l.b16 %v871
        %v1000 = vunpack.c.l.b16 %v872
        %v1001 = vunpack.c.l.b16 %v873
        %v1002 = vunpack.c.l.b16 %v874
        %v1003 = vunpack.c.l.b16 %v875
        %v1004 = vunpack.c.l.b16 %v876
        %v1005 = vpack.c.b16 %v990, %v989
        %v1006 = vpack.c.b16 %v992, %v991
        %v1007 = vpack.c.b16 %v994, %v993
        %v1008 = vpack.c.b16 %v996, %v995
        %v1009 = vpack.c.b16 %v998, %v997
        %v1010 = vpack.c.b16 %v1000, %v999
        %v1011 = vpack.c.b16 %v1002, %v1001
        %v1012 = vpack.c.b16 %v1004, %v1003
        %1021 = vmatpush.bf16.msra.mxu0 %v859
        %1022 = vmatpush.bf16.msra.mxu0 %v857
        %1023 = vmatpush.bf16.msra.mxu0 %v855
        %1024 = vmatpush.bf16.msra.mxu0 %v853
        %1025 = vmatpush.bf16.msra.mxu0 %v851
        %1026 = vmatpush.bf16.msra.mxu0 %v849
        %1027 = vmatpush.bf16.msra.mxu0 %v847
        %1028 = vmatpush.bf16.msra.mxu0 %v845
        %1029 = vmatmul.bf16.gmra.mxu0 %v1005
        %v1030 = vpop.f32.mrf.mxu0
        %v1031 = vadd.f32 %v896, %v1030
        %v1032 = vpop.f32.mrf.mxu0
        %v1033 = vadd.f32 %v901, %v1032
        %1034 = vmatmul.bf16.gmra.mxu0 %v1006
        %v1035 = vpop.f32.mrf.mxu0
        %v1036 = vadd.f32 %v906, %v1035
        %v1037 = vpop.f32.mrf.mxu0
        %v1038 = vadd.f32 %v911, %v1037
        %1039 = vmatmul.bf16.gmra.mxu0 %v1007
        %v1040 = vpop.f32.mrf.mxu0
        %v1041 = vadd.f32 %v916, %v1040
        %v1042 = vpop.f32.mrf.mxu0
        %v1043 = vadd.f32 %v921, %v1042
        %1044 = vmatmul.bf16.gmra.mxu0 %v1008
        %v1045 = vpop.f32.mrf.mxu0
        %v1046 = vadd.f32 %v926, %v1045
        %v1047 = vpop.f32.mrf.mxu0
        %v1048 = vadd.f32 %v931, %v1047
        %1049 = vmatmul.bf16.gmra.mxu0 %v1009
        %v1050 = vpop.f32.mrf.mxu0
        %v1051 = vadd.f32 %v936, %v1050
        %v1052 = vpop.f32.mrf.mxu0
        %v1053 = vadd.f32 %v941, %v1052
        %1054 = vmatmul.bf16.gmra.mxu0 %v1010
        %v1055 = vpop.f32.mrf.mxu0
        %v1056 = vadd.f32 %v946, %v1055
        %v1057 = vpop.f32.mrf.mxu0
        %v1058 = vadd.f32 %v951, %v1057
        %1059 = vmatmul.bf16.gmra.mxu0 %v1011
        %v1060 = vpop.f32.mrf.mxu0
        %v1061 = vadd.f32 %v956, %v1060
        %v1062 = vpop.f32.mrf.mxu0
        %v1063 = vadd.f32 %v961, %v1062
        %1064 = vmatmul.bf16.gmra.mxu0 %v1012
        %v1065 = vpop.f32.mrf.mxu0
        %v1066 = vadd.f32 %v966, %v1065
        %v1067 = vpop.f32.mrf.mxu0
        %v1068 = vadd.f32 %v971, %v1067
        %1069 = vdwg.mxu0
        %1070 = vmatpush.bf16.msra.mxu0 %v860
        %1071 = vmatpush.bf16.msra.mxu0 %v858
        %1072 = vmatpush.bf16.msra.mxu0 %v856
        %1073 = vmatpush.bf16.msra.mxu0 %v854
        %1074 = vmatpush.bf16.msra.mxu0 %v852
        %1075 = vmatpush.bf16.msra.mxu0 %v850
        %1076 = vmatpush.bf16.msra.mxu0 %v848
        %1077 = vmatpush.bf16.msra.mxu0 %v846
        %1078 = vmatmul.bf16.gmra.mxu0 %v1005
        %v1079 = vpop.f32.mrf.mxu0
        %v1080 = vadd.f32 %v896, %v1079
        %v1081 = vpop.f32.mrf.mxu0
        %v1082 = vadd.f32 %v901, %v1081
        %1083 = vmatmul.bf16.gmra.mxu0 %v1006
        %v1084 = vpop.f32.mrf.mxu0
        %v1085 = vadd.f32 %v906, %v1084
        %v1086 = vpop.f32.mrf.mxu0
        %v1087 = vadd.f32 %v911, %v1086
        %1088 = vmatmul.bf16.gmra.mxu0 %v1007
        %v1089 = vpop.f32.mrf.mxu0
        %v1090 = vadd.f32 %v916, %v1089
        %v1091 = vpop.f32.mrf.mxu0
        %v1092 = vadd.f32 %v921, %v1091
        %1093 = vmatmul.bf16.gmra.mxu0 %v1008
        %v1094 = vpop.f32.mrf.mxu0
        %v1095 = vadd.f32 %v926, %v1094
        %v1096 = vpop.f32.mrf.mxu0
        %v1097 = vadd.f32 %v931, %v1096
        %1098 = vmatmul.bf16.gmra.mxu0 %v1009
        %v1099 = vpop.f32.mrf.mxu0
        %v1100 = vadd.f32 %v936, %v1099
        %v1101 = vpop.f32.mrf.mxu0
        %v1102 = vadd.f32 %v941, %v1101
        %1103 = vmatmul.bf16.gmra.mxu0 %v1010
        %v1104 = vpop.f32.mrf.mxu0
        %v1105 = vadd.f32 %v946, %v1104
        %v1106 = vpop.f32.mrf.mxu0
        %v1107 = vadd.f32 %v951, %v1106
        %1108 = vmatmul.bf16.gmra.mxu0 %v1011
        %v1109 = vpop.f32.mrf.mxu0
        %v1110 = vadd.f32 %v956, %v1109
        %v1111 = vpop.f32.mrf.mxu0
        %v1112 = vadd.f32 %v961, %v1111
        %1113 = vmatmul.bf16.gmra.mxu0 %v1012
        %v1114 = vpop.f32.mrf.mxu0
        %v1115 = vadd.f32 %v966, %v1114
        %v1116 = vpop.f32.mrf.mxu0
        %v1117 = vadd.f32 %v971, %v1116
        %1118 = vdwg.mxu0
        %v1119 = vmax.f32 %v1031, 0.0
        %v1120 = vmax.f32 %v1080, 0.0
        %v1121 = vmax.f32 %v1033, 0.0
        %v1122 = vmax.f32 %v1082, 0.0
        %v1123 = vmax.f32 %v1036, 0.0
        %v1124 = vmax.f32 %v1085, 0.0
        %v1125 = vmax.f32 %v1038, 0.0
        %v1126 = vmax.f32 %v1087, 0.0
        %v1127 = vmax.f32 %v1041, 0.0
        %v1128 = vmax.f32 %v1090, 0.0
        %v1129 = vmax.f32 %v1043, 0.0
        %v1130 = vmax.f32 %v1092, 0.0
        %v1131 = vmax.f32 %v1046, 0.0
        %v1132 = vmax.f32 %v1095, 0.0
        %v1133 = vmax.f32 %v1048, 0.0
        %v1134 = vmax.f32 %v1097, 0.0
        %v1135 = vmax.f32 %v1051, 0.0
        %v1136 = vmax.f32 %v1100, 0.0
        %v1137 = vmax.f32 %v1053, 0.0
        %v1138 = vmax.f32 %v1102, 0.0
        %v1139 = vmax.f32 %v1056, 0.0
        %v1140 = vmax.f32 %v1105, 0.0
        %v1141 = vmax.f32 %v1058, 0.0
        %v1142 = vmax.f32 %v1107, 0.0
        %v1143 = vmax.f32 %v1061, 0.0
        %v1144 = vmax.f32 %v1110, 0.0
        %v1145 = vmax.f32 %v1063, 0.0
        %v1146 = vmax.f32 %v1112, 0.0
        %v1147 = vmax.f32 %v1066, 0.0
        %v1148 = vmax.f32 %v1115, 0.0
        %v1149 = vmax.f32 %v1068, 0.0
        %v1150 = vmax.f32 %v1117, 0.0
        %v1151 = vpack.c.bf16 %v1121, %v1119
        %v1152 = vpack.c.bf16 %v1122, %v1120
        %v1153 = vpack.c.bf16 %v1125, %v1123
        %v1154 = vpack.c.bf16 %v1126, %v1124
        %v1155 = vpack.c.bf16 %v1129, %v1127
        %v1156 = vpack.c.bf16 %v1130, %v1128
        %v1157 = vpack.c.bf16 %v1133, %v1131
        %v1158 = vpack.c.bf16 %v1134, %v1132
        %v1159 = vpack.c.bf16 %v1137, %v1135
        %v1160 = vpack.c.bf16 %v1138, %v1136
        %v1161 = vpack.c.bf16 %v1141, %v1139
        %v1162 = vpack.c.bf16 %v1142, %v1140
        %v1163 = vpack.c.bf16 %v1145, %v1143
        %v1164 = vpack.c.bf16 %v1146, %v1144
        %v1165 = vpack.c.bf16 %v1149, %v1147
        %v1166 = vpack.c.bf16 %v1150, %v1148
        %v1167 = vld [vmem:[%s6] sm:$0xf]
        %v1168 = vld [vmem:[%s6 + $0x4] sm:$0xf]
        %v1169 = vld [vmem:[%s6 + $0x8] sm:$0xf]
        %v1170 = vld [vmem:[%s6 + $0xc] sm:$0xf]
        %v1171 = vld [vmem:[%s6 + $0x10] sm:$0xf]
        %v1172 = vld [vmem:[%s6 + $0x14] sm:$0xf]
        %v1173 = vld [vmem:[%s6 + $0x18] sm:$0xf]
        %v1174 = vld [vmem:[%s6 + $0x1c] sm:$0xf]
        %v1175 = vld [vmem:[%s6 + $0x20] sm:$0xf]
        %v1176 = vld [vmem:[%s6 + $0x24] sm:$0xf]
        %v1177 = vld [vmem:[%s6 + $0x28] sm:$0xf]
        %v1178 = vld [vmem:[%s6 + $0x2c] sm:$0xf]
        %v1179 = vld [vmem:[%s6 + $0x30] sm:$0xf]
        %v1180 = vld [vmem:[%s6 + $0x34] sm:$0xf]
        %v1181 = vld [vmem:[%s6 + $0x38] sm:$0xf]
        %v1182 = vld [vmem:[%s6 + $0x3c] sm:$0xf]
        %v1183 = vld [vmem:[%s7] sm:$0xff]
        %v1184 = vld [vmem:[%s7 + $0x8] sm:$0xff]
        %v1185 = vld [vmem:[%s7 + $0x10] sm:$0xff]
        %v1186 = vld [vmem:[%s7 + $0x18] sm:$0xff]
        %v1187 = vld [vmem:[%s7 + $0x20] sm:$0xff]
        %v1188 = vld [vmem:[%s7 + $0x28] sm:$0xff]
        %v1189 = vld [vmem:[%s7 + $0x30] sm:$0xff]
        %v1190 = vld [vmem:[%s7 + $0x38] sm:$0xff]
        %v1191 = vld [vmem:[%s7 + $0x40] sm:$0xff]
        %v1192 = vld [vmem:[%s7 + $0x48] sm:$0xff]
        %v1193 = vld [vmem:[%s7 + $0x50] sm:$0xff]
        %v1194 = vld [vmem:[%s7 + $0x58] sm:$0xff]
        %v1195 = vld [vmem:[%s7 + $0x60] sm:$0xff]
        %v1196 = vld [vmem:[%s7 + $0x68] sm:$0xff]
        %v1197 = vld [vmem:[%s7 + $0x70] sm:$0xff]
        %v1198 = vld [vmem:[%s7 + $0x78] sm:$0xff]
        %1200 = vset.pattern.permute.xlu0 0
        %1201 = vperm.xlu0 %1200, %v1183
        %v1202 = vpop.permute.xlu0 %1201
        %1205 = vset.pattern.permute.xlu0 0
        %1206 = vperm.xlu0 %1205, %v1184
        %v1207 = vpop.permute.xlu0 %1206
        %1210 = vset.pattern.permute.xlu0 0
        %1211 = vperm.xlu0 %1210, %v1185
        %v1212 = vpop.permute.xlu0 %1211
        %1215 = vset.pattern.permute.xlu0 0
        %1216 = vperm.xlu0 %1215, %v1186
        %v1217 = vpop.permute.xlu0 %1216
        %1220 = vset.pattern.permute.xlu0 0
        %1221 = vperm.xlu0 %1220, %v1187
        %v1222 = vpop.permute.xlu0 %1221
        %1225 = vset.pattern.permute.xlu0 0
        %1226 = vperm.xlu0 %1225, %v1188
        %v1227 = vpop.permute.xlu0 %1226
        %1230 = vset.pattern.permute.xlu0 0
        %1231 = vperm.xlu0 %1230, %v1189
        %v1232 = vpop.permute.xlu0 %1231
        %1235 = vset.pattern.permute.xlu0 0
        %1236 = vperm.xlu0 %1235, %v1190
        %v1237 = vpop.permute.xlu0 %1236
        %1240 = vset.pattern.permute.xlu0 0
        %1241 = vperm.xlu0 %1240, %v1191
        %v1242 = vpop.permute.xlu0 %1241
        %1245 = vset.pattern.permute.xlu0 0
        %1246 = vperm.xlu0 %1245, %v1192
        %v1247 = vpop.permute.xlu0 %1246
        %1250 = vset.pattern.permute.xlu0 0
        %1251 = vperm.xlu0 %1250, %v1193
        %v1252 = vpop.permute.xlu0 %1251
        %1255 = vset.pattern.permute.xlu0 0
        %1256 = vperm.xlu0 %1255, %v1194
        %v1257 = vpop.permute.xlu0 %1256
        %1260 = vset.pattern.permute.xlu0 0
        %1261 = vperm.xlu0 %1260, %v1195
        %v1262 = vpop.permute.xlu0 %1261
        %1265 = vset.pattern.permute.xlu0 0
        %1266 = vperm.xlu0 %1265, %v1196
        %v1267 = vpop.permute.xlu0 %1266
        %1270 = vset.pattern.permute.xlu0 0
        %1271 = vperm.xlu0 %1270, %v1197
        %v1272 = vpop.permute.xlu0 %1271
        %1275 = vset.pattern.permute.xlu0 0
        %1276 = vperm.xlu0 %1275, %v1198
        %v1277 = vpop.permute.xlu0 %1276
        %v1295 = vunpack.c.l.b16 %v1167
        %v1296 = vunpack.c.l.b16 %v1168
        %v1297 = vunpack.c.l.b16 %v1169
        %v1298 = vunpack.c.l.b16 %v1170
        %v1299 = vunpack.c.l.b16 %v1171
        %v1300 = vunpack.c.l.b16 %v1172
        %v1301 = vunpack.c.l.b16 %v1173
        %v1302 = vunpack.c.l.b16 %v1174
        %v1303 = vunpack.c.l.b16 %v1175
        %v1304 = vunpack.c.l.b16 %v1176
        %v1305 = vunpack.c.l.b16 %v1177
        %v1306 = vunpack.c.l.b16 %v1178
        %v1307 = vunpack.c.l.b16 %v1179
        %v1308 = vunpack.c.l.b16 %v1180
        %v1309 = vunpack.c.l.b16 %v1181
        %v1310 = vunpack.c.l.b16 %v1182
        %v1311 = vpack.c.b16 %v1296, %v1295
        %v1312 = vpack.c.b16 %v1298, %v1297
        %v1313 = vpack.c.b16 %v1300, %v1299
        %v1314 = vpack.c.b16 %v1302, %v1301
        %v1315 = vpack.c.b16 %v1304, %v1303
        %v1316 = vpack.c.b16 %v1306, %v1305
        %v1317 = vpack.c.b16 %v1308, %v1307
        %v1318 = vpack.c.b16 %v1310, %v1309
        %1327 = vmatpush.bf16.msra.mxu0 %v1165
        %1328 = vmatpush.bf16.msra.mxu0 %v1163
        %1329 = vmatpush.bf16.msra.mxu0 %v1161
        %1330 = vmatpush.bf16.msra.mxu0 %v1159
        %1331 = vmatpush.bf16.msra.mxu0 %v1157
        %1332 = vmatpush.bf16.msra.mxu0 %v1155
        %1333 = vmatpush.bf16.msra.mxu0 %v1153
        %1334 = vmatpush.bf16.msra.mxu0 %v1151
        %1335 = vmatmul.bf16.gmra.mxu0 %v1311
        %v1336 = vpop.f32.mrf.mxu0
        %v1337 = vadd.f32 %v1202, %v1336
        %v1338 = vpop.f32.mrf.mxu0
        %v1339 = vadd.f32 %v1207, %v1338
        %1340 = vmatmul.bf16.gmra.mxu0 %v1312
        %v1341 = vpop.f32.mrf.mxu0
        %v1342 = vadd.f32 %v1212, %v1341
        %v1343 = vpop.f32.mrf.mxu0
        %v1344 = vadd.f32 %v1217, %v1343
        %1345 = vmatmul.bf16.gmra.mxu0 %v1313
        %v1346 = vpop.f32.mrf.mxu0
        %v1347 = vadd.f32 %v1222, %v1346
        %v1348 = vpop.f32.mrf.mxu0
        %v1349 = vadd.f32 %v1227, %v1348
        %1350 = vmatmul.bf16.gmra.mxu0 %v1314
        %v1351 = vpop.f32.mrf.mxu0
        %v1352 = vadd.f32 %v1232, %v1351
        %v1353 = vpop.f32.mrf.mxu0
        %v1354 = vadd.f32 %v1237, %v1353
        %1355 = vmatmul.bf16.gmra.mxu0 %v1315
        %v1356 = vpop.f32.mrf.mxu0
        %v1357 = vadd.f32 %v1242, %v1356
        %v1358 = vpop.f32.mrf.mxu0
        %v1359 = vadd.f32 %v1247, %v1358
        %1360 = vmatmul.bf16.gmra.mxu0 %v1316
        %v1361 = vpop.f32.mrf.mxu0
        %v1362 = vadd.f32 %v1252, %v1361
        %v1363 = vpop.f32.mrf.mxu0
        %v1364 = vadd.f32 %v1257, %v1363
        %1365 = vmatmul.bf16.gmra.mxu0 %v1317
        %v1366 = vpop.f32.mrf.mxu0
        %v1367 = vadd.f32 %v1262, %v1366
        %v1368 = vpop.f32.mrf.mxu0
        %v1369 = vadd.f32 %v1267, %v1368
        %1370 = vmatmul.bf16.gmra.mxu0 %v1318
        %v1371 = vpop.f32.mrf.mxu0
        %v1372 = vadd.f32 %v1272, %v1371
        %v1373 = vpop.f32.mrf.mxu0
        %v1374 = vadd.f32 %v1277, %v1373
        %1375 = vdwg.mxu0
        %1376 = vmatpush.bf16.msra.mxu0 %v1166
        %1377 = vmatpush.bf16.msra.mxu0 %v1164
        %1378 = vmatpush.bf16.msra.mxu0 %v1162
        %1379 = vmatpush.bf16.msra.mxu0 %v1160
        %1380 = vmatpush.bf16.msra.mxu0 %v1158
        %1381 = vmatpush.bf16.msra.mxu0 %v1156
        %1382 = vmatpush.bf16.msra.mxu0 %v1154
        %1383 = vmatpush.bf16.msra.mxu0 %v1152
        %1384 = vmatmul.bf16.gmra.mxu0 %v1311
        %v1385 = vpop.f32.mrf.mxu0
        %v1386 = vadd.f32 %v1202, %v1385
        %v1387 = vpop.f32.mrf.mxu0
        %v1388 = vadd.f32 %v1207, %v1387
        %1389 = vmatmul.bf16.gmra.mxu0 %v1312
        %v1390 = vpop.f32.mrf.mxu0
        %v1391 = vadd.f32 %v1212, %v1390
        %v1392 = vpop.f32.mrf.mxu0
        %v1393 = vadd.f32 %v1217, %v1392
        %1394 = vmatmul.bf16.gmra.mxu0 %v1313
        %v1395 = vpop.f32.mrf.mxu0
        %v1396 = vadd.f32 %v1222, %v1395
        %v1397 = vpop.f32.mrf.mxu0
        %v1398 = vadd.f32 %v1227, %v1397
        %1399 = vmatmul.bf16.gmra.mxu0 %v1314
        %v1400 = vpop.f32.mrf.mxu0
        %v1401 = vadd.f32 %v1232, %v1400
        %v1402 = vpop.f32.mrf.mxu0
        %v1403 = vadd.f32 %v1237, %v1402
        %1404 = vmatmul.bf16.gmra.mxu0 %v1315
        %v1405 = vpop.f32.mrf.mxu0
        %v1406 = vadd.f32 %v1242, %v1405
        %v1407 = vpop.f32.mrf.mxu0
        %v1408 = vadd.f32 %v1247, %v1407
        %1409 = vmatmul.bf16.gmra.mxu0 %v1316
        %v1410 = vpop.f32.mrf.mxu0
        %v1411 = vadd.f32 %v1252, %v1410
        %v1412 = vpop.f32.mrf.mxu0
        %v1413 = vadd.f32 %v1257, %v1412
        %1414 = vmatmul.bf16.gmra.mxu0 %v1317
        %v1415 = vpop.f32.mrf.mxu0
        %v1416 = vadd.f32 %v1262, %v1415
        %v1417 = vpop.f32.mrf.mxu0
        %v1418 = vadd.f32 %v1267, %v1417
        %1419 = vmatmul.bf16.gmra.mxu0 %v1318
        %v1420 = vpop.f32.mrf.mxu0
        %v1421 = vadd.f32 %v1272, %v1420
        %v1422 = vpop.f32.mrf.mxu0
        %v1423 = vadd.f32 %v1277, %v1422
        %1424 = vdwg.mxu0
        %v1425 = vmax.f32 %v1337, 0.0
        %v1426 = vmax.f32 %v1386, 0.0
        %v1427 = vmax.f32 %v1339, 0.0
        %v1428 = vmax.f32 %v1388, 0.0
        %v1429 = vmax.f32 %v1342, 0.0
        %v1430 = vmax.f32 %v1391, 0.0
        %v1431 = vmax.f32 %v1344, 0.0
        %v1432 = vmax.f32 %v1393, 0.0
        %v1433 = vmax.f32 %v1347, 0.0
        %v1434 = vmax.f32 %v1396, 0.0
        %v1435 = vmax.f32 %v1349, 0.0
        %v1436 = vmax.f32 %v1398, 0.0
        %v1437 = vmax.f32 %v1352, 0.0
        %v1438 = vmax.f32 %v1401, 0.0
        %v1439 = vmax.f32 %v1354, 0.0
        %v1440 = vmax.f32 %v1403, 0.0
        %v1441 = vmax.f32 %v1357, 0.0
        %v1442 = vmax.f32 %v1406, 0.0
        %v1443 = vmax.f32 %v1359, 0.0
        %v1444 = vmax.f32 %v1408, 0.0
        %v1445 = vmax.f32 %v1362, 0.0
        %v1446 = vmax.f32 %v1411, 0.0
        %v1447 = vmax.f32 %v1364, 0.0
        %v1448 = vmax.f32 %v1413, 0.0
        %v1449 = vmax.f32 %v1367, 0.0
        %v1450 = vmax.f32 %v1416, 0.0
        %v1451 = vmax.f32 %v1369, 0.0
        %v1452 = vmax.f32 %v1418, 0.0
        %v1453 = vmax.f32 %v1372, 0.0
        %v1454 = vmax.f32 %v1421, 0.0
        %v1455 = vmax.f32 %v1374, 0.0
        %v1456 = vmax.f32 %v1423, 0.0
        %v1457 = vpack.c.bf16 %v1427, %v1425
        %v1458 = vpack.c.bf16 %v1428, %v1426
        %v1459 = vpack.c.bf16 %v1431, %v1429
        %v1460 = vpack.c.bf16 %v1432, %v1430
        %v1461 = vpack.c.bf16 %v1435, %v1433
        %v1462 = vpack.c.bf16 %v1436, %v1434
        %v1463 = vpack.c.bf16 %v1439, %v1437
        %v1464 = vpack.c.bf16 %v1440, %v1438
        %v1465 = vpack.c.bf16 %v1443, %v1441
        %v1466 = vpack.c.bf16 %v1444, %v1442
        %v1467 = vpack.c.bf16 %v1447, %v1445
        %v1468 = vpack.c.bf16 %v1448, %v1446
        %v1469 = vpack.c.bf16 %v1451, %v1449
        %v1470 = vpack.c.bf16 %v1452, %v1450
        %v1471 = vpack.c.bf16 %v1455, %v1453
        %v1472 = vpack.c.bf16 %v1456, %v1454
        %v1473 = vld [vmem:[%s8] sm:$0x1]
        %v1474 = vld [vmem:[%s9] sm:$0x3]
        %1476 = vset.pattern.permute.xlu0 0
        %1477 = vperm.xlu0 %1476, %v1474
        %v1478 = vpop.permute.xlu0 %1477
        %1480 = vmatpush.bf16.msra.mxu0 %v1471
        %1481 = vmatpush.bf16.msra.mxu0 %v1469
        %1482 = vmatpush.bf16.msra.mxu0 %v1467
        %1483 = vmatpush.bf16.msra.mxu0 %v1465
        %1484 = vmatpush.bf16.msra.mxu0 %v1463
        %1485 = vmatpush.bf16.msra.mxu0 %v1461
        %1486 = vmatpush.bf16.msra.mxu0 %v1459
        %1487 = vmatpush.bf16.msra.mxu0 %v1457
        %1488 = vmatmul.bf16.gmra.mxu0 %v1473
        %v1489 = vpop.f32.mrf.mxu0
        %v1490 = vadd.f32 %v1478, %v1489
        %v1491 = vpop.f32.mrf.mxu0
        %1492 = vdwg.mxu0
        %1493 = vmatpush.bf16.msra.mxu0 %v1472
        %1494 = vmatpush.bf16.msra.mxu0 %v1470
        %1495 = vmatpush.bf16.msra.mxu0 %v1468
        %1496 = vmatpush.bf16.msra.mxu0 %v1466
        %1497 = vmatpush.bf16.msra.mxu0 %v1464
        %1498 = vmatpush.bf16.msra.mxu0 %v1462
        %1499 = vmatpush.bf16.msra.mxu0 %v1460
        %1500 = vmatpush.bf16.msra.mxu0 %v1458
        %1501 = vmatmul.bf16.gmra.mxu0 %v1473
        %v1502 = vpop.f32.mrf.mxu0
        %v1503 = vadd.f32 %v1478, %v1502
        %v1504 = vpop.f32.mrf.mxu0
        %1505 = vdwg.mxu0
        %v1506 = vld [vmem:[%s465] ss:$2 sm:$0x3]
        %s1507 = scalar_lea.vmem %s465, 1
        %v1508 = vld [vmem:[%s1507] ss:$2 sm:$0x3]
        %v1510 = vperm.slane %v1508, 0
        %v1511 = vperm.slane %v1508, 1
        %v1514 = vmul.f32 %v1490, %v1510
        %v1515 = vmul.f32 %v1503, %v1511
        %v1518 = vrot.slane %v1515, 7
        %vm1519 = vcmask 1040384
        %v1520 = vsel %vm1519, %v1514, %v1518
        %v1522 = vadd.f32 %v1506, %v1520
        %v1523 = vlaneseq
        %vm1524 = vcmp.ge.s32.totalorder %v1523, 0
        %vm1525 = vcmp.lt.s32.totalorder %v1523, 256
        %vm1526 = vmand %vm1524, %vm1525
        %1527 = vst.msk [vmem:[%s434] ss:$2 sm:$0x3] %vm1526, %v1522
        %vm1528 = vcmp.gt.f32.partialorder %v1490, 0.0
        %vm1529 = vcmp.gt.f32.partialorder %v1503, 0.0
        %v1530 = vmin.f32 %v1490, 0.0
        %v1531 = vmin.f32 %v1503, 0.0
        %v1532 = vmul.f32 %v1530, 1.442695
        %v1533 = vpow.pop %v1532
        %v1534 = vmul.f32 %v1531, 1.442695
        %v1535 = vpow.pop %v1534
        %v1536 = vsub.f32 %v1533, 1.0
        %v1537 = vsub.f32 %v1535, 1.0
        %v1538 = vsel %vm1528, %v1490, %v1536
        %v1539 = vsel %vm1529, %v1503, %v1537
        %v1540 = vadd.f32 %v1538, 1.0
        %v1541 = vadd.f32 %v1539, 1.0
        %v1542 = vmul.f32 %v1540, %v1510
        %v1543 = vmul.f32 %v1541, %v1511
        %1546 = vst [vmem:[#allocation1] sm:$0xff] %v1542
        %1547 = vst [vmem:[#allocation1 + $0x9] sm:$0xff] %v1543
        %s1548 = scalar_lea.vmem [#allocation1], 1
        %v1549 = vld [vmem:[%s1548] ss:$9 sm:$0xff]
        %s1551 = scalar_lea.vmem %s434, 1 [#allocation3]
        %1552 = vst.msk [vmem:[%s1551] ss:$2 sm:$0x3] %vm1526, %v1549
        %s1553 = sand.u32 %s279, 1
        %s1554 = scalar_lea.sflag [#allocation4], %s1553
        %s1555 = sand.u32 %s279, 1
        %s1556 = smul.addr %s1555, 4
        %s1557 = scalar_lea.vmem [#allocation3], %s1556
        // Predicated region
        $region61: #{tpu_custom_call.1} parent=59 // pred_check
          %p1558 = pneg %p289
        $region62: #{tpu_custom_call.1} parent=59 // pred_check_branch
          %1560 = sbr.rel (%p1558) target = $region64
        $region63: #{tpu_custom_call.1} parent=59 // pred_region
          %s1561 = smul.u32 2, %s29
          %1563 = vsyncadd %s1554, 0
          %s1564 = smul.addr %s28, 4
          %s1565 = sadd.s32 %s1561, %s1564
          %s1566 = smul.addr %s1565, 2
          %s1567 = scalar_lea.hbm %s10, %s1566
          %s1569 = sshll.u32 %s1557, 4
          %s1570 = int_to_ptr.vmem [resolvable:$true] %s1569
          %s1571 = sshll.u32 %s1567, 4
          %s1572 = int_to_ptr.hbm [resolvable:$true] %s1571
          %1574 = dma.vmem_to_hbm [thread:$0]  %s1570, 64, %s1572, %s1554
        $region64: #{tpu_custom_call.1} parent=59 // pred_fallthru
          _
      $region60: #{tpu_custom_call.1} parent=5 // pred_fallthru
        _
      %p1575 = scmp.le.s32.totalorder 2, %s19
      // Predicated region
      $region65: #{tpu_custom_call.1} parent=5 // pred_check
        %p1576 = pneg %p1575
      $region66: #{tpu_custom_call.1} parent=5 // pred_check_branch
        %1578 = sbr.rel (%p1576) target = $region68
      $region67: #{tpu_custom_call.1} parent=5 // pred_region
        %s1579 = ssub.s32 %s19, 2
        // Predicated region
        $region69: #{tpu_custom_call.1} parent=67 // pred_check
          %p1580 = pneg %p295
        $region70: #{tpu_custom_call.1} parent=67 // pred_check_branch
          %1582 = sbr.rel (%p1580) target = $region72
        $region71: #{tpu_custom_call.1} parent=67 // pred_region
          %s1583 = sand.u32 %s280, 1
          %s1584 = scalar_lea.sflag [#allocation4], %s1583
          %s1585 = sand.u32 %s280, 1
          %s1586 = smul.addr %s1585, 4
          %s1587 = scalar_lea.vmem [#allocation3], %s1586
          %1589 = dma.done %s1584, 64
        $region72: #{tpu_custom_call.1} parent=67 // pred_fallthru
          _
      $region68: #{tpu_custom_call.1} parent=5 // pred_fallthru
        _
    $region6: #{tpu_custom_call.1} parent=1 // loop_footer
      %s23 = sadd.s32 1, %s19
    $region7: #{tpu_custom_call.1} parent=1 // loop_footer_branch
      %18 = sbr.rel target = $region3
    $region8: #{tpu_custom_call.1} parent=1 // loop_exit
      _
    %1590 = vsyncpa [#allocation4], 1
    %s1591 = scalar_lea.sflag [#allocation4], 1
    %1592 = vsyncpa %s1591, 1

</llo_original>
